<compile_context>
chip_gen: v5e
topology: v5e:2x2
jax: 0.10.0
libtpu: 0.0.40
codegen_flags: <defaults>
</compile_context>

<pallas_src>
import functools

import jax
import jax.numpy as jnp
from jax.experimental import pallas as pl
from jax.experimental.pallas import tpu as pltpu


# ----------------------------------------------------------------------------
# Fused  conv(matmul) + BatchNorm(batch stats) [+ residual] [+ ReLU]  kernel
# ----------------------------------------------------------------------------

def _make_fused_conv_bn_kernel(count, eps, relu, has_residual):
    def kernel(*refs):
        if has_residual:
            a_ref, b_ref, g_ref, bt_ref, r_ref, o_ref, acc_ref = refs
        else:
            a_ref, b_ref, g_ref, bt_ref, o_ref, acc_ref = refs

        k = pl.program_id(1)

        @pl.when(k == 0)
        def _():
            acc_ref[...] = jnp.zeros_like(acc_ref)

        acc_ref[...] += jnp.dot(a_ref[...], b_ref[...],
                                preferred_element_type=jnp.float32)

        @pl.when(k == pl.num_programs(1) - 1)
        def _():
            acc = acc_ref[...]                      # [M, bn] f32 conv output
            inv_n = 1.0 / count
            # Two-pass (centered) batch statistics: numerically safer than
            # E[x^2] - E[x]^2 and still fully VMEM-resident.
            mean = jnp.sum(acc, axis=0, keepdims=True) * inv_n
            cent = acc - mean
            var = jnp.sum(cent * cent, axis=0, keepdims=True) * inv_n
            scale = g_ref[...] * jax.lax.rsqrt(var + eps)
            y = cent * scale + bt_ref[...]
            if has_residual:
                y = y + r_ref[...].astype(jnp.float32)
            if relu:
                y = jnp.maximum(y, 0.0)
            o_ref[...] = y.astype(o_ref.dtype)

    return kernel


def _pick_bk(k):
    for c in (512, 384, 256, 128):
        if k % c == 0:
            return c
    return k            # odd K (stem, K=147): single full-K step


def fused_conv_bn_act(a, w, gamma, beta, residual=None, relu=True, eps=1e-5):
    """a: [M, K] bf16 (im2col), w: [K, Np] bf16, gamma/beta: [1, Np] f32.

    Returns [M, Np] bf16 = relu?(BN(a @ w) [+ residual]).  BN uses batch
    statistics over the M rows (PyTorch training-mode semantics)."""
    M, K = a.shape
    K2, Np = w.shape
    assert K == K2 and Np % 128 == 0
    bn_ = 256 if Np % 256 == 0 else 128
    bk = _pick_bk(K)
    nt, kt = Np // bn_, K // bk

    kernel = _make_fused_conv_bn_kernel(count=float(M), eps=eps, relu=relu,
                                        has_residual=residual is not None)

    in_specs = [
        pl.BlockSpec((M, bk), lambda j, k: (0, k)),     # A (full-M block)
        pl.BlockSpec((bk, bn_), lambda j, k: (k, j)),   # W
        pl.BlockSpec((1, bn_), lambda j, k: (0, j)),    # gamma
        pl.BlockSpec((1, bn_), lambda j, k: (0, j)),    # beta
    ]
    inputs = [a, w, gamma, beta]
    if residual is not None:
        in_specs.append(pl.BlockSpec((M, bn_), lambda j, k: (0, j)))
        inputs.append(residual)

    return pl.pallas_call(
        kernel,
        out_shape=jax.ShapeDtypeStruct((M, Np), jnp.bfloat16),
        grid_spec=pltpu.PrefetchScalarGridSpec(
            num_scalar_prefetch=0,
            grid=(nt, kt),
            in_specs=in_specs,
            out_specs=pl.BlockSpec((M, bn_), lambda j, k: (0, j)),
            scratch_shapes=[pltpu.VMEM((M, bn_), jnp.float32)]),
        compiler_params=pltpu.CompilerParams(
            dimension_semantics=("parallel", "arbitrary")),
    )(*inputs)


# ----------------------------------------------------------------------------
# FC: matmul + bias (f32 logits)
# ----------------------------------------------------------------------------

def _fc_kernel(a_ref, b_ref, bias_ref, o_ref, acc_ref):
    k = pl.program_id(1)

    @pl.when(k == 0)
    def _():
        acc_ref[...] = jnp.zeros_like(acc_ref)

    acc_ref[...] += jnp.dot(a_ref[...], b_ref[...],
                            preferred_element_type=jnp.float32)

    @pl.when(k == pl.num_programs(1) - 1)
    def _():
        o_ref[...] = (acc_ref[...] + bias_ref[...]).astype(o_ref.dtype)


def _fc_matmul(a, w, bias):
    """a: [M, K] bf16, w: [K, Np] bf16, bias: [1, Np] f32 -> [M, Np] f32."""
    M, K = a.shape
    _, Np = w.shape
    bn_, bk = 128, _pick_bk(K)
    return pl.pallas_call(
        _fc_kernel,
        out_shape=jax.ShapeDtypeStruct((M, Np), jnp.float32),
        grid_spec=pltpu.PrefetchScalarGridSpec(
            num_scalar_prefetch=0,
            grid=(Np // bn_, K // bk),
            in_specs=[pl.BlockSpec((M, bk), lambda j, k: (0, k)),
                      pl.BlockSpec((bk, bn_), lambda j, k: (k, j)),
                      pl.BlockSpec((1, bn_), lambda j, k: (0, j))],
            out_specs=pl.BlockSpec((M, bn_), lambda j, k: (0, j)),
            scratch_shapes=[pltpu.VMEM((M, bn_), jnp.float32)]),
        compiler_params=pltpu.CompilerParams(
            dimension_semantics=("parallel", "arbitrary")),
    )(a, w, bias)


# ----------------------------------------------------------------------------
# MaxPool 3x3 / stride 2 / pad 1  (dense 3x3 running max, then XLA subsample)
# ----------------------------------------------------------------------------

def _maxpool_dense_kernel(w0_ref, w1_ref, w2_ref, o_ref):
    # Inputs are the three W-shifted views of the zero-padded activation
    # (post-ReLU, so zero padding == -inf padding for the max).
    m = jnp.maximum(jnp.maximum(w0_ref[...], w1_ref[...]), w2_ref[...])
    hp = m.shape[1]
    o_ref[...] = jnp.maximum(jnp.maximum(m[:, 0:hp - 2], m[:, 1:hp - 1]),
                             m[:, 2:hp])


def _maxpool3x3s2p1(x):
    N, H, W, C = x.shape
    OH = (H - 1) // 2 + 1
    OW = (W - 1) // 2 + 1
    xp = jnp.pad(x, ((0, 0), (1, 1), (1, 1), (0, 0)))        # zeros (post-ReLU)
    w0 = xp[:, :, 0:W, :]
    w1 = xp[:, :, 1:W + 1, :]
    w2 = xp[:, :, 2:W + 2, :]
    dense = pl.pallas_call(
        _maxpool_dense_kernel,
        out_shape=jax.ShapeDtypeStruct((N, H, W, C), x.dtype),
        grid_spec=pltpu.PrefetchScalarGridSpec(
            num_scalar_prefetch=0,
            grid=(N,),
            in_specs=[pl.BlockSpec((1, H + 2, W, C), lambda n: (n, 0, 0, 0))] * 3,
            out_specs=pl.BlockSpec((1, H, W, C), lambda n: (n, 0, 0, 0))),
        compiler_params=pltpu.CompilerParams(
            dimension_semantics=("parallel",)),
    )(w0, w1, w2)
    return dense[:, 0:2 * OH:2, 0:2 * OW:2, :]


# ----------------------------------------------------------------------------
# Global average pool
# ----------------------------------------------------------------------------

def _avgpool_kernel(x_ref, o_ref, *, inv_hw):
    o_ref[...] = (jnp.sum(x_ref[...].astype(jnp.float32), axis=1)
                  * inv_hw).astype(o_ref.dtype)


def _global_avgpool(x):
    N, H, W, C = x.shape
    x3 = x.reshape(N, H * W, C)
    return pl.pallas_call(
        functools.partial(_avgpool_kernel, inv_hw=1.0 / float(H * W)),
        out_shape=jax.ShapeDtypeStruct((N, C), x.dtype),
    )(x3)


# ----------------------------------------------------------------------------
# im2col glue (XLA): pad / strided-slice / reshape -> [M, KH*KW*C]
# ----------------------------------------------------------------------------

def _im2col(x, ksize, stride, padding):
    N, H, W, C = x.shape
    OH = (H + 2 * padding - ksize) // stride + 1
    OW = (W + 2 * padding - ksize) // stride + 1
    if padding:
        x = jnp.pad(x, ((0, 0), (padding, padding), (padding, padding), (0, 0)))
    if ksize == 1:
        if stride > 1:
            x = x[:, ::stride, ::stride, :]
        a = x.reshape(N * OH * OW, C)
    else:
        cols = []
        for kh in range(ksize):
            for kw in range(ksize):
                cols.append(x[:, kh:kh + stride * (OH - 1) + 1:stride,
                              kw:kw + stride * (OW - 1) + 1:stride, :])
        a = jnp.stack(cols, axis=3).reshape(N * OH * OW, ksize * ksize * C)
    return a, (N, OH, OW)


# ----------------------------------------------------------------------------
# ResNet-152 (Bottleneck, layers = [3, 8, 36, 3])
# ----------------------------------------------------------------------------

@functools.partial(jax.jit, static_argnames=("stride", "has_ds"))
def bottleneck_forward(p, x, stride, has_ds):
    N, H, W, C = x.shape

    a1, (n, oh, ow) = _im2col(x, 1, 1, 0)
    o1 = fused_conv_bn_act(a1, p["w1"], p["g1"], p["b1"], relu=True)
    x1 = o1.reshape(n, oh, ow, o1.shape[1])

    a2, (n, oh, ow) = _im2col(x1, 3, stride, 1)
    o2 = fused_conv_bn_act(a2, p["w2"], p["g2"], p["b2"], relu=True)
    x2 = o2.reshape(n, oh, ow, o2.shape[1])

    if has_ds:
        ad, _ = _im2col(x, 1, stride, 0)
        idn = fused_conv_bn_act(ad, p["wd"], p["gd"], p["bd"], relu=False)
    else:
        idn = x.reshape(N * H * W, C)

    a3, _ = _im2col(x2, 1, 1, 0)
    o3 = fused_conv_bn_act(a3, p["w3"], p["g3"], p["b3"],
                           residual=idn, relu=True)
    return o3.reshape(n, oh, ow, o3.shape[1])


@jax.jit
def _stem_forward(stem_w, stem_g, stem_b, x_nchw):
    x = jnp.transpose(x_nchw, (0, 2, 3, 1)).astype(jnp.bfloat16)   # NCHW->NHWC
    a, (n, oh, ow) = _im2col(x, 7, 2, 3)
    o = fused_conv_bn_act(a, stem_w, stem_g, stem_b, relu=True)
    x = o.reshape(n, oh, ow, o.shape[1])
    return _maxpool3x3s2p1(x)


@jax.jit
def _head_forward(x, fc_w, fc_b):
    feat = _global_avgpool(x)                  # [N, 2048] bf16 (== flatten)
    return _fc_matmul(feat, fc_w, fc_b)        # [N, 128] f32 (padded classes)


_STAGE_STRIDES = (1, 2, 2, 2)


def resnet152_lyz_forward(params, x_nchw, num_classes=10):
    x = _stem_forward(params["stem_w"], params["stem_g"], params["stem_b"],
                      x_nchw)
    for blocks, stage_stride in zip(params["layers"], _STAGE_STRIDES):
        for bi, p in enumerate(blocks):
            s = stage_stride if bi == 0 else 1
            x = bottleneck_forward(p, x, stride=s, has_ds=("wd" in p))
    logits = _head_forward(x, params["fc_w"], params["fc_b"])
    return logits[:, :num_classes]


# ----------------------------------------------------------------------------
# Parameter init: weights are pre-transposed / pre-padded ONCE to the matmul
# layout [KH*KW*ICpad, OCpad] in bf16; BN params are f32 [1, OCpad].
# ----------------------------------------------------------------------------

def _cpad(c):
    return max(128, ((c + 127) // 128) * 128)


def init_resnet152_params(num_classes=10, seed=0):
    key = jax.random.PRNGKey(seed)
    cnt = [0]

    def nk():
        cnt[0] += 1
        return jax.random.fold_in(key, cnt[0])

    def conv_w(oc, ic, k, ic_pad=None, oc_pad=None):
        ic_pad = _cpad(ic) if ic_pad is None else ic_pad
        oc_pad = _cpad(oc) if oc_pad is None else oc_pad
        fan_in = ic * k * k
        w = jax.random.normal(nk(), (oc, ic, k, k), jnp.float32) * \
            (2.0 / fan_in) ** 0.5
        w = jnp.pad(w, ((0, oc_pad - oc), (0, ic_pad - ic), (0, 0), (0, 0)))
        w = jnp.transpose(w, (2, 3, 1, 0)).reshape(k * k * ic_pad, oc_pad)
        return w.astype(jnp.bfloat16)

    def bn_p(c, c_pad=None):
        c_pad = _cpad(c) if c_pad is None else c_pad
        g = jnp.concatenate([jnp.ones((1, c), jnp.float32),
                             jnp.zeros((1, c_pad - c), jnp.float32)], axis=1)
        b = jnp.zeros((1, c_pad), jnp.float32)
        return g, b

    params = {}
    params["stem_w"] = conv_w(64, 3, 7, ic_pad=3)     # [147, 128], single K step
    params["stem_g"], params["stem_b"] = bn_p(64)

    layers_cfg = [(64, 3), (128, 8), (256, 36), (512, 3)]
    in_c = 64
    layers = []
    for li, (width, nblocks) in enumerate(layers_cfg):
        stage_stride = _STAGE_STRIDES[li]
        blocks = []
        for bi in range(nblocks):
            s = stage_stride if bi == 0 else 1
            has_ds = (s != 1) or (in_c != width * 4)
            p = {
                "w1": conv_w(width, in_c, 1),
                "w2": conv_w(width, width, 3),
                "w3": conv_w(width * 4, width, 1),
            }
            p["g1"], p["b1"] = bn_p(width)
            p["g2"], p["b2"] = bn_p(width)
            p["g3"], p["b3"] = bn_p(width * 4)
            if has_ds:
                p["wd"] = conv_w(width * 4, in_c, 1)
                p["gd"], p["bd"] = bn_p(width * 4)
            blocks.append(p)
            in_c = width * 4
        layers.append(blocks)
    params["layers"] = layers

    bound = 1.0 / (2048.0 ** 0.5)
    oc_pad = _cpad(num_classes)                       # 128
    fc_w = jax.random.uniform(nk(), (num_classes, 2048), jnp.float32,
                              -bound, bound)
    fc_b = jax.random.uniform(nk(), (num_classes,), jnp.float32,
                              -bound, bound)
    params["fc_w"] = jnp.pad(fc_w, ((0, oc_pad - num_classes), (0, 0))
                             ).T.astype(jnp.bfloat16)          # [2048, 128]
    params["fc_b"] = jnp.pad(fc_b.reshape(1, -1),
                             ((0, 0), (0, oc_pad - num_classes)))  # [1, 128]
    return params


if __name__ == "__main__":
    num_classes = 10
    params = init_resnet152_params(num_classes=num_classes, seed=0)

    # Small input consistent with the module: NCHW, 3 input channels.
    x = jax.random.normal(jax.random.PRNGKey(0), (2, 3, 32, 32), jnp.float32)

    y = resnet152_lyz_forward(params, x, num_classes=num_classes)
    y = jax.block_until_ready(y)

    assert y.shape == (2, num_classes), y.shape
    assert bool(jnp.all(jnp.isfinite(y)))
    print("KERNEL_OK")
</pallas_src>

<mosaic_0001>
module attributes {stable_mosaic.version = 11 : i64} {
  func.func @kernel(%arg0: i32, %arg1: i32, %arg2: memref<512x147xbf16, #tpu.memory_space<vmem>>, %arg3: memref<147x128xbf16, #tpu.memory_space<vmem>>, %arg4: memref<1x128xf32, #tpu.memory_space<vmem>>, %arg5: memref<1x128xf32, #tpu.memory_space<vmem>>, %arg6: memref<512x128xbf16, #tpu.memory_space<vmem>>, %arg7: memref<512x128xf32, #tpu.memory_space<vmem>>) attributes {dimension_semantics = [#tpu.dimension_semantics<parallel>, #tpu.dimension_semantics<arbitrary>], iteration_bounds = array<i64: 1, 1>, scalar_prefetch = 0 : i64, scratch_operands = 1 : i64, tpu.core_type = #tpu.core_type<tc>, window_params = [{transform_indices = @transform_0, window_bounds = array<i64: 512, 147>}, {transform_indices = @transform_1, window_bounds = array<i64: 147, 128>}, {transform_indices = @transform_2, window_bounds = array<i64: 1, 128>}, {transform_indices = @transform_3, window_bounds = array<i64: 1, 128>}, {transform_indices = @transform_4, window_bounds = array<i64: 512, 128>}]} {
    %c0_i32 = arith.constant 0 : i32
    %0 = arith.cmpi eq, %arg1, %c0_i32 : i32
    %1 = arith.extui %0 : i1 to i32
    %c0_i32_0 = arith.constant 0 : i32
    %2 = arith.cmpi ne, %1, %c0_i32_0 : i32
    scf.if %2 {
      %cst_10 = arith.constant 0.000000e+00 : f32
      %12 = vector.broadcast %cst_10 : f32 to vector<512x128xf32>
      %c0_11 = arith.constant 0 : index
      %c0_12 = arith.constant 0 : index
      %13 = vector.load %arg7[%c0_11, %c0_12] : memref<512x128xf32, #tpu.memory_space<vmem>>, vector<512x128xf32>
      tpu.vector_store %arg7[%c0_11, %c0_12], %12 {strides = array<i32>} : memref<512x128xf32, #tpu.memory_space<vmem>>, vector<512x128xf32>,
    } else {
    }
    %c0 = arith.constant 0 : index
    %c0_1 = arith.constant 0 : index
    %3 = vector.load %arg7[%c0, %c0_1] : memref<512x128xf32, #tpu.memory_space<vmem>>, vector<512x128xf32>
    %c0_2 = arith.constant 0 : index
    %c0_3 = arith.constant 0 : index
    %4 = vector.load %arg2[%c0_2, %c0_3] : memref<512x147xbf16, #tpu.memory_space<vmem>>, vector<512x147xbf16>
    %c0_4 = arith.constant 0 : index
    %c0_5 = arith.constant 0 : index
    %5 = vector.load %arg3[%c0_4, %c0_5] : memref<147x128xbf16, #tpu.memory_space<vmem>>, vector<147x128xbf16>
    %cst = arith.constant dense<0.000000e+00> : vector<512x128xf32>
    %6 = tpu.matmul %4, %5, %cst {dimension_numbers = #tpu.dot_dimension_numbers<[1], [0], [0], [1], [0, 0, 1, 1], [], []>} : vector<512x147xbf16>, vector<147x128xbf16>, vector<512x128xf32> -> vector<512x128xf32>
    %7 = arith.addf %3, %6 : vector<512x128xf32>
    %c0_6 = arith.constant 0 : index
    %c0_7 = arith.constant 0 : index
    %8 = vector.load %arg7[%c0_6, %c0_7] : memref<512x128xf32, #tpu.memory_space<vmem>>, vector<512x128xf32>
    tpu.vector_store %arg7[%c0_6, %c0_7], %7 {strides = array<i32>} : memref<512x128xf32, #tpu.memory_space<vmem>>, vector<512x128xf32>,
    %c0_i32_8 = arith.constant 0 : i32
    %9 = arith.cmpi eq, %arg1, %c0_i32_8 : i32
    %10 = arith.extui %9 : i1 to i32
    %c0_i32_9 = arith.constant 0 : i32
    %11 = arith.cmpi ne, %10, %c0_i32_9 : i32
    scf.if %11 {
      %c0_10 = arith.constant 0 : index
      %c0_11 = arith.constant 0 : index
      %12 = vector.load %arg7[%c0_10, %c0_11] : memref<512x128xf32, #tpu.memory_space<vmem>>, vector<512x128xf32>
      %cst_12 = arith.constant dense<0.000000e+00> : vector<128xf32>
      %13 = vector.multi_reduction <add>, %12, %cst_12 [0] : vector<512x128xf32> to vector<128xf32>
      %14 = vector.shape_cast %13 : vector<128xf32> to vector<1x128xf32>
      %cst_13 = arith.constant 0.001953125 : f32
      %15 = vector.broadcast %cst_13 : f32 to vector<1x128xf32>
      %16 = arith.mulf %14, %15 : vector<1x128xf32>
      %17 = vector.broadcast %16 : vector<1x128xf32> to vector<512x128xf32>
      %18 = arith.subf %12, %17 : vector<512x128xf32>
      %19 = arith.mulf %18, %18 : vector<512x128xf32>
      %cst_14 = arith.constant dense<0.000000e+00> : vector<128xf32>
      %20 = vector.multi_reduction <add>, %19, %cst_14 [0] : vector<512x128xf32> to vector<128xf32>
      %21 = vector.shape_cast %20 : vector<128xf32> to vector<1x128xf32>
      %cst_15 = arith.constant 0.001953125 : f32
      %22 = vector.broadcast %cst_15 : f32 to vector<1x128xf32>
      %23 = arith.mulf %21, %22 : vector<1x128xf32>
      %c0_16 = arith.constant 0 : index
      %c0_17 = arith.constant 0 : index
      %24 = vector.load %arg4[%c0_16, %c0_17] : memref<1x128xf32, #tpu.memory_space<vmem>>, vector<1x128xf32>
      %cst_18 = arith.constant 9.99999974E-6 : f32
      %25 = vector.broadcast %cst_18 : f32 to vector<1x128xf32>
      %26 = arith.addf %23, %25 : vector<1x128xf32>
      %27 = math.rsqrt %26 : vector<1x128xf32>
      %28 = arith.mulf %24, %27 : vector<1x128xf32>
      %29 = vector.broadcast %28 : vector<1x128xf32> to vector<512x128xf32>
      %30 = arith.mulf %18, %29 : vector<512x128xf32>
      %c0_19 = arith.constant 0 : index
      %c0_20 = arith.constant 0 : index
      %31 = vector.load %arg5[%c0_19, %c0_20] : memref<1x128xf32, #tpu.memory_space<vmem>>, vector<1x128xf32>
      %32 = vector.broadcast %31 : vector<1x128xf32> to vector<512x128xf32>
      %33 = arith.addf %30, %32 : vector<512x128xf32>
      %cst_21 = arith.constant 0.000000e+00 : f32
      %34 = vector.broadcast %cst_21 : f32 to vector<512x128xf32>
      %35 = arith.maximumf %33, %34 : vector<512x128xf32>
      %36 = arith.truncf %35 : vector<512x128xf32> to vector<512x128xbf16>
      %c0_22 = arith.constant 0 : index
      %c0_23 = arith.constant 0 : index
      %37 = vector.load %arg6[%c0_22, %c0_23] : memref<512x128xbf16, #tpu.memory_space<vmem>>, vector<512x128xbf16>
      tpu.vector_store %arg6[%c0_22, %c0_23], %36 {strides = array<i32>} : memref<512x128xbf16, #tpu.memory_space<vmem>>, vector<512x128xbf16>,
    } else {
    }
    return
  }
  func.func @transform_0(%arg0: i32, %arg1: i32) -> (i32, i32) {
    %c0_i32 = arith.constant 0 : i32
    %c0_i32_0 = arith.constant 0 : i32
    return %c0_i32, %arg1 : i32, i32
  }
  func.func @transform_1(%arg0: i32, %arg1: i32) -> (i32, i32) {
    %c0_i32 = arith.constant 0 : i32
    return %arg1, %arg0 : i32, i32
  }
  func.func @transform_2(%arg0: i32, %arg1: i32) -> (i32, i32) {
    %c0_i32 = arith.constant 0 : i32
    %c0_i32_0 = arith.constant 0 : i32
    return %c0_i32, %arg0 : i32, i32
  }
  func.func @transform_3(%arg0: i32, %arg1: i32) -> (i32, i32) {
    %c0_i32 = arith.constant 0 : i32
    %c0_i32_0 = arith.constant 0 : i32
    return %c0_i32, %arg0 : i32, i32
  }
  func.func @transform_4(%arg0: i32, %arg1: i32) -> (i32, i32) {
    %c0_i32 = arith.constant 0 : i32
    %c0_i32_0 = arith.constant 0 : i32
    return %c0_i32, %arg0 : i32, i32
  }
}

module attributes {stable_mosaic.version = 11 : i64} {
  func.func @_maxpool_dense_kernel(%arg0: i32, %arg1: memref<1x18x16x128xbf16, #tpu.memory_space<vmem>>, %arg2: memref<1x18x16x128xbf16, #tpu.memory_space<vmem>>, %arg3: memref<1x18x16x128xbf16, #tpu.memory_space<vmem>>, %arg4: memref<1x16x16x128xbf16, #tpu.memory_space<vmem>>) attributes {dimension_semantics = [#tpu.dimension_semantics<parallel>], iteration_bounds = array<i64: 2>, scalar_prefetch = 0 : i64, scratch_operands = 0 : i64, tpu.core_type = #tpu.core_type<tc>, window_params = [{transform_indices = @transform_0, window_bounds = array<i64: 1, 18, 16, 128>}, {transform_indices = @transform_1, window_bounds = array<i64: 1, 18, 16, 128>}, {transform_indices = @transform_2, window_bounds = array<i64: 1, 18, 16, 128>}, {transform_indices = @transform_3, window_bounds = array<i64: 1, 16, 16, 128>}]} {
    %c0 = arith.constant 0 : index
    %c0_0 = arith.constant 0 : index
    %c0_1 = arith.constant 0 : index
    %c0_2 = arith.constant 0 : index
    %0 = vector.load %arg1[%c0, %c0_0, %c0_1, %c0_2] : memref<1x18x16x128xbf16, #tpu.memory_space<vmem>>, vector<1x18x16x128xbf16>
    %c0_3 = arith.constant 0 : index
    %c0_4 = arith.constant 0 : index
    %c0_5 = arith.constant 0 : index
    %c0_6 = arith.constant 0 : index
    %1 = vector.load %arg2[%c0_3, %c0_4, %c0_5, %c0_6] : memref<1x18x16x128xbf16, #tpu.memory_space<vmem>>, vector<1x18x16x128xbf16>
    %2 = arith.maximumf %0, %1 : vector<1x18x16x128xbf16>
    %c0_7 = arith.constant 0 : index
    %c0_8 = arith.constant 0 : index
    %c0_9 = arith.constant 0 : index
    %c0_10 = arith.constant 0 : index
    %3 = vector.load %arg3[%c0_7, %c0_8, %c0_9, %c0_10] : memref<1x18x16x128xbf16, #tpu.memory_space<vmem>>, vector<1x18x16x128xbf16>
    %4 = arith.maximumf %2, %3 : vector<1x18x16x128xbf16>
    %5 = vector.extract_strided_slice %4 {offsets = [0, 0, 0, 0], sizes = [1, 16, 16, 128], strides = [1, 1, 1, 1]} : vector<1x18x16x128xbf16> to vector<1x16x16x128xbf16>
    %6 = vector.extract_strided_slice %4 {offsets = [0, 1, 0, 0], sizes = [1, 16, 16, 128], strides = [1, 1, 1, 1]} : vector<1x18x16x128xbf16> to vector<1x16x16x128xbf16>
    %7 = arith.maximumf %5, %6 : vector<1x16x16x128xbf16>
    %8 = vector.extract_strided_slice %4 {offsets = [0, 2, 0, 0], sizes = [1, 16, 16, 128], strides = [1, 1, 1, 1]} : vector<1x18x16x128xbf16> to vector<1x16x16x128xbf16>
    %9 = arith.maximumf %7, %8 : vector<1x16x16x128xbf16>
    %c0_11 = arith.constant 0 : index
    %c0_12 = arith.constant 0 : index
    %c0_13 = arith.constant 0 : index
    %c0_14 = arith.constant 0 : index
    %10 = vector.load %arg4[%c0_11, %c0_12, %c0_13, %c0_14] : memref<1x16x16x128xbf16, #tpu.memory_space<vmem>>, vector<1x16x16x128xbf16>
    tpu.vector_store %arg4[%c0_11, %c0_12, %c0_13, %c0_14], %9 {strides = array<i32>} : memref<1x16x16x128xbf16, #tpu.memory_space<vmem>>, vector<1x16x16x128xbf16>,
    return
  }
  func.func @transform_0(%arg0: i32) -> (i32, i32, i32, i32) {
    %c0_i32 = arith.constant 0 : i32
    %c0_i32_0 = arith.constant 0 : i32
    %c0_i32_1 = arith.constant 0 : i32
    %c0_i32_2 = arith.constant 0 : i32
    return %arg0, %c0_i32, %c0_i32_0, %c0_i32_1 : i32, i32, i32, i32
  }
  func.func @transform_1(%arg0: i32) -> (i32, i32, i32, i32) {
    %c0_i32 = arith.constant 0 : i32
    %c0_i32_0 = arith.constant 0 : i32
    %c0_i32_1 = arith.constant 0 : i32
    %c0_i32_2 = arith.constant 0 : i32
    return %arg0, %c0_i32, %c0_i32_0, %c0_i32_1 : i32, i32, i32, i32
  }
  func.func @transform_2(%arg0: i32) -> (i32, i32, i32, i32) {
    %c0_i32 = arith.constant 0 : i32
    %c0_i32_0 = arith.constant 0 : i32
    %c0_i32_1 = arith.constant 0 : i32
    %c0_i32_2 = arith.constant 0 : i32
    return %arg0, %c0_i32, %c0_i32_0, %c0_i32_1 : i32, i32, i32, i32
  }
  func.func @transform_3(%arg0: i32) -> (i32, i32, i32, i32) {
    %c0_i32 = arith.constant 0 : i32
    %c0_i32_0 = arith.constant 0 : i32
    %c0_i32_1 = arith.constant 0 : i32
    %c0_i32_2 = arith.constant 0 : i32
    return %arg0, %c0_i32, %c0_i32_0, %c0_i32_1 : i32, i32, i32, i32
  }
}

</mosaic_0001>

<llo_original>
// kernel: _stem_forward.3
$region0: #{_stem_forward.3}
  #allocation0 [shape = 'u32[]', space=smem, size = 0x4, offset = 0x4, fixed_abs, tag = 'smem constant byte address 0x4 - core index']
  #allocation1 [shape = 'u32[72,128]{1,0:T(1,128)}', space=vmem, size = 0x9000, scoped, tag = 'internal scratch']
  %s0 = inlined_call_operand.vmem [shape: bf16[2,18,16,128], index: 0, kind: input, shape index: {}]
  %s1 = inlined_call_operand.vmem [shape: bf16[2,18,16,128], index: 1, kind: input, shape index: {}]
  %s2 = inlined_call_operand.vmem [shape: bf16[2,18,16,128], index: 2, kind: input, shape index: {}]
  %s3 = inlined_call_operand.vmem [shape: bf16[2,16,16,128], index: 3, kind: output, shape index: {}]
  %s4 = sld [smem:[#allocation0]]
  $region45: #{_stem_forward.3} parent=0
    _
  %s6 = ssub.s32 1, %s4
  %s7 = scalar_select 0, %s6, %s4
  loop: start=0, step=1, limit=4
  $region2: #{_stem_forward.3} parent=0 // loop_pre_header
    _
  $region3: #{_stem_forward.3} parent=0 // loop_header
    %s9 = sphi 0, %s13
    %p10 = scmp.ge.s32.totalorder %s9, 4
    %s19 = sphi 0, %s21
    %s22 = sphi 0, %s19
    %s23 = sphi 0, %s22
    %s39 = sphi 0, %s23
    %s45 = sphi 0, %s47
    %s48 = sphi 0, %s45
    %s49 = sphi 0, %s48
    %s65 = sphi 0, %s49
    %s71 = sphi 0, %s73
    %s74 = sphi 0, %s71
    %s75 = sphi 0, %s74
    %s91 = sphi 0, %s75
    %s97 = sphi 0, %s99
    %s100 = sphi 0, %s97
    %s101 = sphi 0, %s100
    %s117 = sphi 0, %s101
  $region4: #{_stem_forward.3} parent=0 // loop_header_branch
    %12 = sbr.rel (%p10) target = $region8
  $region5: #{_stem_forward.3} parent=0 // loop_body
    %s14 = ssub.s32 %s9, 1
    %s15 = ssub.s32 %s9, 2
    %s16 = sadd.s32 %s9, 1
    %s17 = ssub.s32 %s9, %s16
    %p18 = scmp.eq.s32.totalorder %s17, 0
    %s20 = sadd.s32 %s19, 1
    %s21 = scalar_select %p18, %s19, %s20
    %p24 = pneg %p18
    %p25 = scmp.eq.s32.totalorder %s9, 1
    %p26 = por %p24, %p25
    %p27 = scmp.ne.s32.totalorder %s19, %s22
    %p28 = scmp.eq.s32.totalorder %s9, 0
    %p29 = por %p27, %p28
    %p30 = scmp.ne.s32.totalorder %s19, %s22
    %p31 = scmp.eq.s32.totalorder %s14, 1
    %p32 = por %p30, %p31
    %p33 = scmp.ne.s32.totalorder %s22, %s23
    %p34 = scmp.eq.s32.totalorder %s14, 0
    %p35 = por %p33, %p34
    %p36 = scmp.ne.s32.totalorder %s22, %s23
    %p37 = scmp.eq.s32.totalorder %s15, 1
    %p38 = por %p36, %p37
    %p40 = scmp.ne.s32.totalorder %s23, %s39
    %p41 = scmp.eq.s32.totalorder %s15, 0
    %p42 = por %p40, %p41
    %s43 = ssub.s32 %s9, %s16
    %p44 = scmp.eq.s32.totalorder %s43, 0
    %s46 = sadd.s32 %s45, 1
    %s47 = scalar_select %p44, %s45, %s46
    %p50 = pneg %p44
    %p51 = scmp.eq.s32.totalorder %s9, 1
    %p52 = por %p50, %p51
    %p53 = scmp.ne.s32.totalorder %s45, %s48
    %p54 = scmp.eq.s32.totalorder %s9, 0
    %p55 = por %p53, %p54
    %p56 = scmp.ne.s32.totalorder %s45, %s48
    %p57 = scmp.eq.s32.totalorder %s14, 1
    %p58 = por %p56, %p57
    %p59 = scmp.ne.s32.totalorder %s48, %s49
    %p60 = scmp.eq.s32.totalorder %s14, 0
    %p61 = por %p59, %p60
    %p62 = scmp.ne.s32.totalorder %s48, %s49
    %p63 = scmp.eq.s32.totalorder %s15, 1
    %p64 = por %p62, %p63
    %p66 = scmp.ne.s32.totalorder %s49, %s65
    %p67 = scmp.eq.s32.totalorder %s15, 0
    %p68 = por %p66, %p67
    %s69 = ssub.s32 %s9, %s16
    %p70 = scmp.eq.s32.totalorder %s69, 0
    %s72 = sadd.s32 %s71, 1
    %s73 = scalar_select %p70, %s71, %s72
    %p76 = pneg %p70
    %p77 = scmp.eq.s32.totalorder %s9, 1
    %p78 = por %p76, %p77
    %p79 = scmp.ne.s32.totalorder %s71, %s74
    %p80 = scmp.eq.s32.totalorder %s9, 0
    %p81 = por %p79, %p80
    %p82 = scmp.ne.s32.totalorder %s71, %s74
    %p83 = scmp.eq.s32.totalorder %s14, 1
    %p84 = por %p82, %p83
    %p85 = scmp.ne.s32.totalorder %s74, %s75
    %p86 = scmp.eq.s32.totalorder %s14, 0
    %p87 = por %p85, %p86
    %p88 = scmp.ne.s32.totalorder %s74, %s75
    %p89 = scmp.eq.s32.totalorder %s15, 1
    %p90 = por %p88, %p89
    %p92 = scmp.ne.s32.totalorder %s75, %s91
    %p93 = scmp.eq.s32.totalorder %s15, 0
    %p94 = por %p92, %p93
    %s95 = ssub.s32 %s9, %s16
    %p96 = scmp.eq.s32.totalorder %s95, 0
    %s98 = sadd.s32 %s97, 1
    %s99 = scalar_select %p96, %s97, %s98
    %p102 = pneg %p96
    %p103 = scmp.eq.s32.totalorder %s9, 1
    %p104 = por %p102, %p103
    %p105 = scmp.ne.s32.totalorder %s97, %s100
    %p106 = scmp.eq.s32.totalorder %s9, 0
    %p107 = por %p105, %p106
    %p108 = scmp.ne.s32.totalorder %s97, %s100
    %p109 = scmp.eq.s32.totalorder %s14, 1
    %p110 = por %p108, %p109
    %p111 = scmp.ne.s32.totalorder %s100, %s101
    %p112 = scmp.eq.s32.totalorder %s14, 0
    %p113 = por %p111, %p112
    %p114 = scmp.ne.s32.totalorder %s100, %s101
    %p115 = scmp.eq.s32.totalorder %s15, 1
    %p116 = por %p114, %p115
    %p118 = scmp.ne.s32.totalorder %s101, %s117
    %p119 = scmp.eq.s32.totalorder %s15, 0
    %p120 = por %p118, %p119
    %p121 = scmp.le.s32.totalorder 1, %s9
    %p122 = scmp.lt.s32.totalorder %s9, 3
    %p123 = pnand %p121, %p122
    %p124 = pneg %p123
    // Predicated region
    $region9: #{_stem_forward.3} parent=5 // pred_check
      _
    $region10: #{_stem_forward.3} parent=5 // pred_check_branch
      %126 = sbr.rel (%p123) target = $region12
    $region11: #{_stem_forward.3} parent=5 // pred_region
      %s127 = ssub.s32 %s9, 1
    $region12: #{_stem_forward.3} parent=5 // pred_fallthru
      _
    %p128 = scmp.lt.s32.totalorder %s9, 2
    // Predicated region
    $region13: #{_stem_forward.3} parent=5 // pred_check
      %p129 = pneg %p128
    $region14: #{_stem_forward.3} parent=5 // pred_check_branch
      %131 = sbr.rel (%p129) target = $region16
    $region15: #{_stem_forward.3} parent=5 // pred_region
      // Predicated region
      $region17: #{_stem_forward.3} parent=15 // pred_check
        %p132 = pneg %p29
      $region18: #{_stem_forward.3} parent=15 // pred_check_branch
        %134 = sbr.rel (%p132) target = $region20
      $region19: #{_stem_forward.3} parent=15 // pred_region
        %p135 = scmp.lt.s32.totalorder %s9, 1
        %s136 = scalar_select %p135, %s9, 1
        %s137 = smul.addr %s136, 36
        %s138 = smul.addr %s137, 4
        %s139 = scalar_lea.vmem %s0, %s138
      $region20: #{_stem_forward.3} parent=15 // pred_fallthru
        _
      // Predicated region
      $region21: #{_stem_forward.3} parent=15 // pred_check
        %p140 = pneg %p55
      $region22: #{_stem_forward.3} parent=15 // pred_check_branch
        %142 = sbr.rel (%p140) target = $region24
      $region23: #{_stem_forward.3} parent=15 // pred_region
        %p143 = scmp.lt.s32.totalorder %s9, 1
        %s144 = scalar_select %p143, %s9, 1
        %s145 = smul.addr %s144, 36
        %s146 = smul.addr %s145, 4
        %s147 = scalar_lea.vmem %s1, %s146
      $region24: #{_stem_forward.3} parent=15 // pred_fallthru
        _
      // Predicated region
      $region25: #{_stem_forward.3} parent=15 // pred_check
        %p148 = pneg %p81
      $region26: #{_stem_forward.3} parent=15 // pred_check_branch
        %150 = sbr.rel (%p148) target = $region28
      $region27: #{_stem_forward.3} parent=15 // pred_region
        %p151 = scmp.lt.s32.totalorder %s9, 1
        %s152 = scalar_select %p151, %s9, 1
        %s153 = smul.addr %s152, 36
        %s154 = smul.addr %s153, 4
        %s155 = scalar_lea.vmem %s2, %s154
      $region28: #{_stem_forward.3} parent=15 // pred_fallthru
        _
    $region16: #{_stem_forward.3} parent=5 // pred_fallthru
      _
    %p156 = scmp.le.s32.totalorder 1, %s9
    %p157 = scmp.lt.s32.totalorder %s9, 3
    %p158 = pnand %p156, %p157
    %p159 = pneg %p158
    // Predicated region
    $region29: #{_stem_forward.3} parent=5 // pred_check
      _
    $region30: #{_stem_forward.3} parent=5 // pred_check_branch
      %161 = sbr.rel (%p158) target = $region32
    $region31: #{_stem_forward.3} parent=5 // pred_region
      %s162 = ssub.s32 %s9, 1
      %p163 = scmp.lt.s32.totalorder %s14, 1
      %s164 = scalar_select %p163, %s14, 1
      %s165 = smul.addr %s164, 36
      %s166 = smul.addr %s165, 4
      %s167 = scalar_lea.vmem %s0, %s166
      %p168 = pneg %p35
      %p169 = pneg %p32
      %p170 = scmp.lt.s32.totalorder %s14, 1
      %s171 = scalar_select %p170, %s14, 1
      %s172 = smul.addr %s171, 36
      %s173 = smul.addr %s172, 4
      %s174 = scalar_lea.vmem %s1, %s173
      %p175 = pneg %p61
      %p176 = pneg %p58
      %p177 = scmp.lt.s32.totalorder %s14, 1
      %s178 = scalar_select %p177, %s14, 1
      %s179 = smul.addr %s178, 36
      %s180 = smul.addr %s179, 4
      %s181 = scalar_lea.vmem %s2, %s180
      %p182 = pneg %p87
      %p183 = pneg %p84
      %p184 = pneg %p113
      %p185 = pneg %p110
      %p186 = scmp.lt.s32.totalorder %s14, 1
      %s187 = scalar_select %p186, %s14, 1
      %s188 = smul.addr %s187, 32
      %s189 = smul.addr %s188, 4
      %s190 = scalar_lea.vmem %s3, %s189
      %p191 = scmp.lt.s32.totalorder %s14, 1
      %s192 = scalar_select %p191, %s14, 1
      %s193 = smul.addr %s192, 36
      %s194 = smul.addr %s193, 4
      %s195 = scalar_lea.vmem %s0, %s194
      %p196 = scmp.lt.s32.totalorder %s14, 1
      %s197 = scalar_select %p196, %s14, 1
      %s198 = smul.addr %s197, 36
      %s199 = smul.addr %s198, 4
      %s200 = scalar_lea.vmem %s1, %s199
      %p201 = scmp.lt.s32.totalorder %s14, 1
      %s202 = scalar_select %p201, %s14, 1
      %s203 = smul.addr %s202, 36
      %s204 = smul.addr %s203, 4
      %s205 = scalar_lea.vmem %s2, %s204
      %p206 = scmp.lt.s32.totalorder %s14, 1
      %s207 = scalar_select %p206, %s14, 1
      %s208 = smul.addr %s207, 32
      %s209 = smul.addr %s208, 4
      %s210 = scalar_lea.vmem %s3, %s209
      %v211 = vld [vmem:[%s195] sm:$0xf]
      %v212 = vld [vmem:[%s195 + $0x4] sm:$0xf]
      %v213 = vld [vmem:[%s195 + $0x8] sm:$0xf]
      %v214 = vld [vmem:[%s195 + $0xc] sm:$0xf]
      %v215 = vld [vmem:[%s195 + $0x10] sm:$0xf]
      %v216 = vld [vmem:[%s195 + $0x14] sm:$0xf]
      %v217 = vld [vmem:[%s195 + $0x18] sm:$0xf]
      %v218 = vld [vmem:[%s195 + $0x1c] sm:$0xf]
      %v219 = vld [vmem:[%s195 + $0x20] sm:$0xf]
      %v220 = vld [vmem:[%s195 + $0x24] sm:$0xf]
      %v221 = vld [vmem:[%s195 + $0x28] sm:$0xf]
      %v222 = vld [vmem:[%s195 + $0x2c] sm:$0xf]
      %v223 = vld [vmem:[%s195 + $0x30] sm:$0xf]
      %v224 = vld [vmem:[%s195 + $0x34] sm:$0xf]
      %v225 = vld [vmem:[%s195 + $0x38] sm:$0xf]
      %v226 = vld [vmem:[%s195 + $0x3c] sm:$0xf]
      %v227 = vld [vmem:[%s195 + $0x40] sm:$0xf]
      %v228 = vld [vmem:[%s195 + $0x44] sm:$0xf]
      %v229 = vld [vmem:[%s195 + $0x48] sm:$0xf]
      %v230 = vld [vmem:[%s195 + $0x4c] sm:$0xf]
      %v231 = vld [vmem:[%s195 + $0x50] sm:$0xf]
      %v232 = vld [vmem:[%s195 + $0x54] sm:$0xf]
      %v233 = vld [vmem:[%s195 + $0x58] sm:$0xf]
      %v234 = vld [vmem:[%s195 + $0x5c] sm:$0xf]
      %v235 = vld [vmem:[%s195 + $0x60] sm:$0xf]
      %v236 = vld [vmem:[%s195 + $0x64] sm:$0xf]
      %v237 = vld [vmem:[%s195 + $0x68] sm:$0xf]
      %v238 = vld [vmem:[%s195 + $0x6c] sm:$0xf]
      %v239 = vld [vmem:[%s195 + $0x70] sm:$0xf]
      %v240 = vld [vmem:[%s195 + $0x74] sm:$0xf]
      %v241 = vld [vmem:[%s195 + $0x78] sm:$0xf]
      %v242 = vld [vmem:[%s195 + $0x7c] sm:$0xf]
      %v243 = vld [vmem:[%s195 + $0x80] sm:$0xf]
      %v244 = vld [vmem:[%s195 + $0x84] sm:$0xf]
      %v245 = vld [vmem:[%s195 + $0x88] sm:$0xf]
      %v246 = vld [vmem:[%s195 + $0x8c] sm:$0xf]
      %v247 = vld [vmem:[%s200] sm:$0xf]
      %v248 = vld [vmem:[%s200 + $0x4] sm:$0xf]
      %v249 = vld [vmem:[%s200 + $0x8] sm:$0xf]
      %v250 = vld [vmem:[%s200 + $0xc] sm:$0xf]
      %v251 = vld [vmem:[%s200 + $0x10] sm:$0xf]
      %v252 = vld [vmem:[%s200 + $0x14] sm:$0xf]
      %v253 = vld [vmem:[%s200 + $0x18] sm:$0xf]
      %v254 = vld [vmem:[%s200 + $0x1c] sm:$0xf]
      %v255 = vld [vmem:[%s200 + $0x20] sm:$0xf]
      %v256 = vld [vmem:[%s200 + $0x24] sm:$0xf]
      %v257 = vld [vmem:[%s200 + $0x28] sm:$0xf]
      %v258 = vld [vmem:[%s200 + $0x2c] sm:$0xf]
      %v259 = vld [vmem:[%s200 + $0x30] sm:$0xf]
      %v260 = vld [vmem:[%s200 + $0x34] sm:$0xf]
      %v261 = vld [vmem:[%s200 + $0x38] sm:$0xf]
      %v262 = vld [vmem:[%s200 + $0x3c] sm:$0xf]
      %v263 = vld [vmem:[%s200 + $0x40] sm:$0xf]
      %v264 = vld [vmem:[%s200 + $0x44] sm:$0xf]
      %v265 = vld [vmem:[%s200 + $0x48] sm:$0xf]
      %v266 = vld [vmem:[%s200 + $0x4c] sm:$0xf]
      %v267 = vld [vmem:[%s200 + $0x50] sm:$0xf]
      %v268 = vld [vmem:[%s200 + $0x54] sm:$0xf]
      %v269 = vld [vmem:[%s200 + $0x58] sm:$0xf]
      %v270 = vld [vmem:[%s200 + $0x5c] sm:$0xf]
      %v271 = vld [vmem:[%s200 + $0x60] sm:$0xf]
      %v272 = vld [vmem:[%s200 + $0x64] sm:$0xf]
      %v273 = vld [vmem:[%s200 + $0x68] sm:$0xf]
      %v274 = vld [vmem:[%s200 + $0x6c] sm:$0xf]
      %v275 = vld [vmem:[%s200 + $0x70] sm:$0xf]
      %v276 = vld [vmem:[%s200 + $0x74] sm:$0xf]
      %v277 = vld [vmem:[%s200 + $0x78] sm:$0xf]
      %v278 = vld [vmem:[%s200 + $0x7c] sm:$0xf]
      %v279 = vld [vmem:[%s200 + $0x80] sm:$0xf]
      %v280 = vld [vmem:[%s200 + $0x84] sm:$0xf]
      %v281 = vld [vmem:[%s200 + $0x88] sm:$0xf]
      %v282 = vld [vmem:[%s200 + $0x8c] sm:$0xf]
      %v283 = vunpack.c.l.bf16 %v211
      %v284 = vunpack.c.l.bf16 %v212
      %v285 = vunpack.c.l.bf16 %v213
      %v286 = vunpack.c.l.bf16 %v214
      %v287 = vunpack.c.l.bf16 %v215
      %v288 = vunpack.c.l.bf16 %v216
      %v289 = vunpack.c.l.bf16 %v217
      %v290 = vunpack.c.l.bf16 %v218
      %v291 = vunpack.c.l.bf16 %v219
      %v292 = vunpack.c.l.bf16 %v220
      %v293 = vunpack.c.l.bf16 %v221
      %v294 = vunpack.c.l.bf16 %v222
      %v295 = vunpack.c.l.bf16 %v223
      %v296 = vunpack.c.l.bf16 %v224
      %v297 = vunpack.c.l.bf16 %v225
      %v298 = vunpack.c.l.bf16 %v226
      %v299 = vunpack.c.l.bf16 %v227
      %v300 = vunpack.c.l.bf16 %v228
      %v301 = vunpack.c.l.bf16 %v229
      %v302 = vunpack.c.l.bf16 %v230
      %v303 = vunpack.c.l.bf16 %v231
      %v304 = vunpack.c.l.bf16 %v232
      %v305 = vunpack.c.l.bf16 %v233
      %v306 = vunpack.c.l.bf16 %v234
      %v307 = vunpack.c.l.bf16 %v235
      %v308 = vunpack.c.l.bf16 %v236
      %v309 = vunpack.c.l.bf16 %v237
      %v310 = vunpack.c.l.bf16 %v238
      %v311 = vunpack.c.l.bf16 %v239
      %v312 = vunpack.c.l.bf16 %v240
      %v313 = vunpack.c.l.bf16 %v241
      %v314 = vunpack.c.l.bf16 %v242
      %v315 = vunpack.c.l.bf16 %v243
      %v316 = vunpack.c.l.bf16 %v244
      %v317 = vunpack.c.l.bf16 %v245
      %v318 = vunpack.c.l.bf16 %v246
      %v319 = vunpack.c.l.bf16 %v247
      %v320 = vunpack.c.l.bf16 %v248
      %v321 = vunpack.c.l.bf16 %v249
      %v322 = vunpack.c.l.bf16 %v250
      %v323 = vunpack.c.l.bf16 %v251
      %v324 = vunpack.c.l.bf16 %v252
      %v325 = vunpack.c.l.bf16 %v253
      %v326 = vunpack.c.l.bf16 %v254
      %v327 = vunpack.c.l.bf16 %v255
      %v328 = vunpack.c.l.bf16 %v256
      %v329 = vunpack.c.l.bf16 %v257
      %v330 = vunpack.c.l.bf16 %v258
      %v331 = vunpack.c.l.bf16 %v259
      %v332 = vunpack.c.l.bf16 %v260
      %v333 = vunpack.c.l.bf16 %v261
      %v334 = vunpack.c.l.bf16 %v262
      %v335 = vunpack.c.l.bf16 %v263
      %v336 = vunpack.c.l.bf16 %v264
      %v337 = vunpack.c.l.bf16 %v265
      %v338 = vunpack.c.l.bf16 %v266
      %v339 = vunpack.c.l.bf16 %v267
      %v340 = vunpack.c.l.bf16 %v268
      %v341 = vunpack.c.l.bf16 %v269
      %v342 = vunpack.c.l.bf16 %v270
      %v343 = vunpack.c.l.bf16 %v271
      %v344 = vunpack.c.l.bf16 %v272
      %v345 = vunpack.c.l.bf16 %v273
      %v346 = vunpack.c.l.bf16 %v274
      %v347 = vunpack.c.l.bf16 %v275
      %v348 = vunpack.c.l.bf16 %v276
      %v349 = vunpack.c.l.bf16 %v277
      %v350 = vunpack.c.l.bf16 %v278
      %v351 = vunpack.c.l.bf16 %v279
      %v352 = vunpack.c.l.bf16 %v280
      %v353 = vunpack.c.l.bf16 %v281
      %v354 = vunpack.c.l.bf16 %v282
      %v355 = vmax.f32 %v283, %v319
      %v356 = vmax.f32 %v284, %v320
      %v357 = vmax.f32 %v285, %v321
      %v358 = vmax.f32 %v286, %v322
      %v359 = vmax.f32 %v287, %v323
      %v360 = vmax.f32 %v288, %v324
      %v361 = vmax.f32 %v289, %v325
      %v362 = vmax.f32 %v290, %v326
      %v363 = vmax.f32 %v291, %v327
      %v364 = vmax.f32 %v292, %v328
      %v365 = vmax.f32 %v293, %v329
      %v366 = vmax.f32 %v294, %v330
      %v367 = vmax.f32 %v295, %v331
      %v368 = vmax.f32 %v296, %v332
      %v369 = vmax.f32 %v297, %v333
      %v370 = vmax.f32 %v298, %v334
      %v371 = vmax.f32 %v299, %v335
      %v372 = vmax.f32 %v300, %v336
      %v373 = vmax.f32 %v301, %v337
      %v374 = vmax.f32 %v302, %v338
      %v375 = vmax.f32 %v303, %v339
      %v376 = vmax.f32 %v304, %v340
      %v377 = vmax.f32 %v305, %v341
      %v378 = vmax.f32 %v306, %v342
      %v379 = vmax.f32 %v307, %v343
      %v380 = vmax.f32 %v308, %v344
      %v381 = vmax.f32 %v309, %v345
      %v382 = vmax.f32 %v310, %v346
      %v383 = vmax.f32 %v311, %v347
      %v384 = vmax.f32 %v312, %v348
      %v385 = vmax.f32 %v313, %v349
      %v386 = vmax.f32 %v314, %v350
      %v387 = vmax.f32 %v315, %v351
      %v388 = vmax.f32 %v316, %v352
      %v389 = vmax.f32 %v317, %v353
      %v390 = vmax.f32 %v318, %v354
      %v391 = vpack.c.bf16 %v355, %v355
      %v392 = vpack.c.bf16 %v356, %v356
      %v393 = vpack.c.bf16 %v357, %v357
      %v394 = vpack.c.bf16 %v358, %v358
      %v395 = vpack.c.bf16 %v359, %v359
      %v396 = vpack.c.bf16 %v360, %v360
      %v397 = vpack.c.bf16 %v361, %v361
      %v398 = vpack.c.bf16 %v362, %v362
      %v399 = vpack.c.bf16 %v363, %v363
      %v400 = vpack.c.bf16 %v364, %v364
      %v401 = vpack.c.bf16 %v365, %v365
      %v402 = vpack.c.bf16 %v366, %v366
      %v403 = vpack.c.bf16 %v367, %v367
      %v404 = vpack.c.bf16 %v368, %v368
      %v405 = vpack.c.bf16 %v369, %v369
      %v406 = vpack.c.bf16 %v370, %v370
      %v407 = vpack.c.bf16 %v371, %v371
      %v408 = vpack.c.bf16 %v372, %v372
      %v409 = vpack.c.bf16 %v373, %v373
      %v410 = vpack.c.bf16 %v374, %v374
      %v411 = vpack.c.bf16 %v375, %v375
      %v412 = vpack.c.bf16 %v376, %v376
      %v413 = vpack.c.bf16 %v377, %v377
      %v414 = vpack.c.bf16 %v378, %v378
      %v415 = vpack.c.bf16 %v379, %v379
      %v416 = vpack.c.bf16 %v380, %v380
      %v417 = vpack.c.bf16 %v381, %v381
      %v418 = vpack.c.bf16 %v382, %v382
      %v419 = vpack.c.bf16 %v383, %v383
      %v420 = vpack.c.bf16 %v384, %v384
      %v421 = vpack.c.bf16 %v385, %v385
      %v422 = vpack.c.bf16 %v386, %v386
      %v423 = vpack.c.bf16 %v387, %v387
      %v424 = vpack.c.bf16 %v388, %v388
      %v425 = vpack.c.bf16 %v389, %v389
      %v426 = vpack.c.bf16 %v390, %v390
      %v427 = vld [vmem:[%s205] sm:$0xf]
      %v428 = vld [vmem:[%s205 + $0x4] sm:$0xf]
      %v429 = vld [vmem:[%s205 + $0x8] sm:$0xf]
      %v430 = vld [vmem:[%s205 + $0xc] sm:$0xf]
      %v431 = vld [vmem:[%s205 + $0x10] sm:$0xf]
      %v432 = vld [vmem:[%s205 + $0x14] sm:$0xf]
      %v433 = vld [vmem:[%s205 + $0x18] sm:$0xf]
      %v434 = vld [vmem:[%s205 + $0x1c] sm:$0xf]
      %v435 = vld [vmem:[%s205 + $0x20] sm:$0xf]
      %v436 = vld [vmem:[%s205 + $0x24] sm:$0xf]
      %v437 = vld [vmem:[%s205 + $0x28] sm:$0xf]
      %v438 = vld [vmem:[%s205 + $0x2c] sm:$0xf]
      %v439 = vld [vmem:[%s205 + $0x30] sm:$0xf]
      %v440 = vld [vmem:[%s205 + $0x34] sm:$0xf]
      %v441 = vld [vmem:[%s205 + $0x38] sm:$0xf]
      %v442 = vld [vmem:[%s205 + $0x3c] sm:$0xf]
      %v443 = vld [vmem:[%s205 + $0x40] sm:$0xf]
      %v444 = vld [vmem:[%s205 + $0x44] sm:$0xf]
      %v445 = vld [vmem:[%s205 + $0x48] sm:$0xf]
      %v446 = vld [vmem:[%s205 + $0x4c] sm:$0xf]
      %v447 = vld [vmem:[%s205 + $0x50] sm:$0xf]
      %v448 = vld [vmem:[%s205 + $0x54] sm:$0xf]
      %v449 = vld [vmem:[%s205 + $0x58] sm:$0xf]
      %v450 = vld [vmem:[%s205 + $0x5c] sm:$0xf]
      %v451 = vld [vmem:[%s205 + $0x60] sm:$0xf]
      %v452 = vld [vmem:[%s205 + $0x64] sm:$0xf]
      %v453 = vld [vmem:[%s205 + $0x68] sm:$0xf]
      %v454 = vld [vmem:[%s205 + $0x6c] sm:$0xf]
      %v455 = vld [vmem:[%s205 + $0x70] sm:$0xf]
      %v456 = vld [vmem:[%s205 + $0x74] sm:$0xf]
      %v457 = vld [vmem:[%s205 + $0x78] sm:$0xf]
      %v458 = vld [vmem:[%s205 + $0x7c] sm:$0xf]
      %v459 = vld [vmem:[%s205 + $0x80] sm:$0xf]
      %v460 = vld [vmem:[%s205 + $0x84] sm:$0xf]
      %v461 = vld [vmem:[%s205 + $0x88] sm:$0xf]
      %v462 = vld [vmem:[%s205 + $0x8c] sm:$0xf]
      %v463 = vunpack.c.l.bf16 %v391
      %v464 = vunpack.c.l.bf16 %v392
      %v465 = vunpack.c.l.bf16 %v393
      %v466 = vunpack.c.l.bf16 %v394
      %v467 = vunpack.c.l.bf16 %v395
      %v468 = vunpack.c.l.bf16 %v396
      %v469 = vunpack.c.l.bf16 %v397
      %v470 = vunpack.c.l.bf16 %v398
      %v471 = vunpack.c.l.bf16 %v399
      %v472 = vunpack.c.l.bf16 %v400
      %v473 = vunpack.c.l.bf16 %v401
      %v474 = vunpack.c.l.bf16 %v402
      %v475 = vunpack.c.l.bf16 %v403
      %v476 = vunpack.c.l.bf16 %v404
      %v477 = vunpack.c.l.bf16 %v405
      %v478 = vunpack.c.l.bf16 %v406
      %v479 = vunpack.c.l.bf16 %v407
      %v480 = vunpack.c.l.bf16 %v408
      %v481 = vunpack.c.l.bf16 %v409
      %v482 = vunpack.c.l.bf16 %v410
      %v483 = vunpack.c.l.bf16 %v411
      %v484 = vunpack.c.l.bf16 %v412
      %v485 = vunpack.c.l.bf16 %v413
      %v486 = vunpack.c.l.bf16 %v414
      %v487 = vunpack.c.l.bf16 %v415
      %v488 = vunpack.c.l.bf16 %v416
      %v489 = vunpack.c.l.bf16 %v417
      %v490 = vunpack.c.l.bf16 %v418
      %v491 = vunpack.c.l.bf16 %v419
      %v492 = vunpack.c.l.bf16 %v420
      %v493 = vunpack.c.l.bf16 %v421
      %v494 = vunpack.c.l.bf16 %v422
      %v495 = vunpack.c.l.bf16 %v423
      %v496 = vunpack.c.l.bf16 %v424
      %v497 = vunpack.c.l.bf16 %v425
      %v498 = vunpack.c.l.bf16 %v426
      %v499 = vunpack.c.l.bf16 %v427
      %v500 = vunpack.c.l.bf16 %v428
      %v501 = vunpack.c.l.bf16 %v429
      %v502 = vunpack.c.l.bf16 %v430
      %v503 = vunpack.c.l.bf16 %v431
      %v504 = vunpack.c.l.bf16 %v432
      %v505 = vunpack.c.l.bf16 %v433
      %v506 = vunpack.c.l.bf16 %v434
      %v507 = vunpack.c.l.bf16 %v435
      %v508 = vunpack.c.l.bf16 %v436
      %v509 = vunpack.c.l.bf16 %v437
      %v510 = vunpack.c.l.bf16 %v438
      %v511 = vunpack.c.l.bf16 %v439
      %v512 = vunpack.c.l.bf16 %v440
      %v513 = vunpack.c.l.bf16 %v441
      %v514 = vunpack.c.l.bf16 %v442
      %v515 = vunpack.c.l.bf16 %v443
      %v516 = vunpack.c.l.bf16 %v444
      %v517 = vunpack.c.l.bf16 %v445
      %v518 = vunpack.c.l.bf16 %v446
      %v519 = vunpack.c.l.bf16 %v447
      %v520 = vunpack.c.l.bf16 %v448
      %v521 = vunpack.c.l.bf16 %v449
      %v522 = vunpack.c.l.bf16 %v450
      %v523 = vunpack.c.l.bf16 %v451
      %v524 = vunpack.c.l.bf16 %v452
      %v525 = vunpack.c.l.bf16 %v453
      %v526 = vunpack.c.l.bf16 %v454
      %v527 = vunpack.c.l.bf16 %v455
      %v528 = vunpack.c.l.bf16 %v456
      %v529 = vunpack.c.l.bf16 %v457
      %v530 = vunpack.c.l.bf16 %v458
      %v531 = vunpack.c.l.bf16 %v459
      %v532 = vunpack.c.l.bf16 %v460
      %v533 = vunpack.c.l.bf16 %v461
      %v534 = vunpack.c.l.bf16 %v462
      %v535 = vmax.f32 %v463, %v499
      %v536 = vmax.f32 %v464, %v500
      %v537 = vmax.f32 %v465, %v501
      %v538 = vmax.f32 %v466, %v502
      %v539 = vmax.f32 %v467, %v503
      %v540 = vmax.f32 %v468, %v504
      %v541 = vmax.f32 %v469, %v505
      %v542 = vmax.f32 %v470, %v506
      %v543 = vmax.f32 %v471, %v507
      %v544 = vmax.f32 %v472, %v508
      %v545 = vmax.f32 %v473, %v509
      %v546 = vmax.f32 %v474, %v510
      %v547 = vmax.f32 %v475, %v511
      %v548 = vmax.f32 %v476, %v512
      %v549 = vmax.f32 %v477, %v513
      %v550 = vmax.f32 %v478, %v514
      %v551 = vmax.f32 %v479, %v515
      %v552 = vmax.f32 %v480, %v516
      %v553 = vmax.f32 %v481, %v517
      %v554 = vmax.f32 %v482, %v518
      %v555 = vmax.f32 %v483, %v519
      %v556 = vmax.f32 %v484, %v520
      %v557 = vmax.f32 %v485, %v521
      %v558 = vmax.f32 %v486, %v522
      %v559 = vmax.f32 %v487, %v523
      %v560 = vmax.f32 %v488, %v524
      %v561 = vmax.f32 %v489, %v525
      %v562 = vmax.f32 %v490, %v526
      %v563 = vmax.f32 %v491, %v527
      %v564 = vmax.f32 %v492, %v528
      %v565 = vmax.f32 %v493, %v529
      %v566 = vmax.f32 %v494, %v530
      %v567 = vmax.f32 %v495, %v531
      %v568 = vmax.f32 %v496, %v532
      %v569 = vmax.f32 %v497, %v533
      %v570 = vmax.f32 %v498, %v534
      %v571 = vpack.c.bf16 %v535, %v535
      %v572 = vpack.c.bf16 %v536, %v536
      %v573 = vpack.c.bf16 %v537, %v537
      %v574 = vpack.c.bf16 %v538, %v538
      %v575 = vpack.c.bf16 %v539, %v539
      %v576 = vpack.c.bf16 %v540, %v540
      %v577 = vpack.c.bf16 %v541, %v541
      %v578 = vpack.c.bf16 %v542, %v542
      %v579 = vpack.c.bf16 %v543, %v543
      %v580 = vpack.c.bf16 %v544, %v544
      %v581 = vpack.c.bf16 %v545, %v545
      %v582 = vpack.c.bf16 %v546, %v546
      %v583 = vpack.c.bf16 %v547, %v547
      %v584 = vpack.c.bf16 %v548, %v548
      %v585 = vpack.c.bf16 %v549, %v549
      %v586 = vpack.c.bf16 %v550, %v550
      %v587 = vpack.c.bf16 %v551, %v551
      %v588 = vpack.c.bf16 %v552, %v552
      %v589 = vpack.c.bf16 %v553, %v553
      %v590 = vpack.c.bf16 %v554, %v554
      %v591 = vpack.c.bf16 %v555, %v555
      %v592 = vpack.c.bf16 %v556, %v556
      %v593 = vpack.c.bf16 %v557, %v557
      %v594 = vpack.c.bf16 %v558, %v558
      %v595 = vpack.c.bf16 %v559, %v559
      %v596 = vpack.c.bf16 %v560, %v560
      %v597 = vpack.c.bf16 %v561, %v561
      %v598 = vpack.c.bf16 %v562, %v562
      %v599 = vpack.c.bf16 %v563, %v563
      %v600 = vpack.c.bf16 %v564, %v564
      %v601 = vpack.c.bf16 %v565, %v565
      %v602 = vpack.c.bf16 %v566, %v566
      %v603 = vpack.c.bf16 %v567, %v567
      %v604 = vpack.c.bf16 %v568, %v568
      %v605 = vpack.c.bf16 %v569, %v569
      %v606 = vpack.c.bf16 %v570, %v570
      %v607 = vunpack.c.l.bf16 %v571
      %v608 = vunpack.c.l.bf16 %v572
      %v609 = vunpack.c.l.bf16 %v573
      %v610 = vunpack.c.l.bf16 %v574
      %v611 = vunpack.c.l.bf16 %v575
      %v612 = vunpack.c.l.bf16 %v576
      %v613 = vunpack.c.l.bf16 %v577
      %v614 = vunpack.c.l.bf16 %v578
      %v615 = vunpack.c.l.bf16 %v579
      %v616 = vunpack.c.l.bf16 %v580
      %v617 = vunpack.c.l.bf16 %v581
      %v618 = vunpack.c.l.bf16 %v582
      %v619 = vunpack.c.l.bf16 %v583
      %v620 = vunpack.c.l.bf16 %v584
      %v621 = vunpack.c.l.bf16 %v585
      %v622 = vunpack.c.l.bf16 %v586
      %v623 = vunpack.c.l.bf16 %v587
      %v624 = vunpack.c.l.bf16 %v588
      %v625 = vunpack.c.l.bf16 %v589
      %v626 = vunpack.c.l.bf16 %v590
      %v627 = vunpack.c.l.bf16 %v591
      %v628 = vunpack.c.l.bf16 %v592
      %v629 = vunpack.c.l.bf16 %v593
      %v630 = vunpack.c.l.bf16 %v594
      %v631 = vunpack.c.l.bf16 %v595
      %v632 = vunpack.c.l.bf16 %v596
      %v633 = vunpack.c.l.bf16 %v597
      %v634 = vunpack.c.l.bf16 %v598
      %v635 = vunpack.c.l.bf16 %v599
      %v636 = vunpack.c.l.bf16 %v600
      %v637 = vunpack.c.l.bf16 %v601
      %v638 = vunpack.c.l.bf16 %v602
      %v639 = vunpack.c.l.bf16 %v603
      %v640 = vunpack.c.l.bf16 %v604
      %v641 = vmax.f32 %v607, %v609
      %v642 = vmax.f32 %v608, %v610
      %v643 = vmax.f32 %v609, %v611
      %v644 = vmax.f32 %v610, %v612
      %v645 = vmax.f32 %v611, %v613
      %v646 = vmax.f32 %v612, %v614
      %v647 = vmax.f32 %v613, %v615
      %v648 = vmax.f32 %v614, %v616
      %v649 = vmax.f32 %v615, %v617
      %v650 = vmax.f32 %v616, %v618
      %v651 = vmax.f32 %v617, %v619
      %v652 = vmax.f32 %v618, %v620
      %v653 = vmax.f32 %v619, %v621
      %v654 = vmax.f32 %v620, %v622
      %v655 = vmax.f32 %v621, %v623
      %v656 = vmax.f32 %v622, %v624
      %v657 = vmax.f32 %v623, %v625
      %v658 = vmax.f32 %v624, %v626
      %v659 = vmax.f32 %v625, %v627
      %v660 = vmax.f32 %v626, %v628
      %v661 = vmax.f32 %v627, %v629
      %v662 = vmax.f32 %v628, %v630
      %v663 = vmax.f32 %v629, %v631
      %v664 = vmax.f32 %v630, %v632
      %v665 = vmax.f32 %v631, %v633
      %v666 = vmax.f32 %v632, %v634
      %v667 = vmax.f32 %v633, %v635
      %v668 = vmax.f32 %v634, %v636
      %v669 = vmax.f32 %v635, %v637
      %v670 = vmax.f32 %v636, %v638
      %v671 = vmax.f32 %v637, %v639
      %v672 = vmax.f32 %v638, %v640
      %v673 = vpack.c.bf16 %v641, %v641
      %v674 = vpack.c.bf16 %v642, %v642
      %v675 = vpack.c.bf16 %v643, %v643
      %v676 = vpack.c.bf16 %v644, %v644
      %v677 = vpack.c.bf16 %v645, %v645
      %v678 = vpack.c.bf16 %v646, %v646
      %v679 = vpack.c.bf16 %v647, %v647
      %v680 = vpack.c.bf16 %v648, %v648
      %v681 = vpack.c.bf16 %v649, %v649
      %v682 = vpack.c.bf16 %v650, %v650
      %v683 = vpack.c.bf16 %v651, %v651
      %v684 = vpack.c.bf16 %v652, %v652
      %v685 = vpack.c.bf16 %v653, %v653
      %v686 = vpack.c.bf16 %v654, %v654
      %v687 = vpack.c.bf16 %v655, %v655
      %v688 = vpack.c.bf16 %v656, %v656
      %v689 = vpack.c.bf16 %v657, %v657
      %v690 = vpack.c.bf16 %v658, %v658
      %v691 = vpack.c.bf16 %v659, %v659
      %v692 = vpack.c.bf16 %v660, %v660
      %v693 = vpack.c.bf16 %v661, %v661
      %v694 = vpack.c.bf16 %v662, %v662
      %v695 = vpack.c.bf16 %v663, %v663
      %v696 = vpack.c.bf16 %v664, %v664
      %v697 = vpack.c.bf16 %v665, %v665
      %v698 = vpack.c.bf16 %v666, %v666
      %v699 = vpack.c.bf16 %v667, %v667
      %v700 = vpack.c.bf16 %v668, %v668
      %v701 = vpack.c.bf16 %v669, %v669
      %v702 = vpack.c.bf16 %v670, %v670
      %v703 = vpack.c.bf16 %v671, %v671
      %v704 = vpack.c.bf16 %v672, %v672
      %v705 = vunpack.c.l.bf16 %v673
      %v706 = vunpack.c.l.bf16 %v674
      %v707 = vunpack.c.l.bf16 %v675
      %v708 = vunpack.c.l.bf16 %v676
      %v709 = vunpack.c.l.bf16 %v677
      %v710 = vunpack.c.l.bf16 %v678
      %v711 = vunpack.c.l.bf16 %v679
      %v712 = vunpack.c.l.bf16 %v680
      %v713 = vunpack.c.l.bf16 %v681
      %v714 = vunpack.c.l.bf16 %v682
      %v715 = vunpack.c.l.bf16 %v683
      %v716 = vunpack.c.l.bf16 %v684
      %v717 = vunpack.c.l.bf16 %v685
      %v718 = vunpack.c.l.bf16 %v686
      %v719 = vunpack.c.l.bf16 %v687
      %v720 = vunpack.c.l.bf16 %v688
      %v721 = vunpack.c.l.bf16 %v689
      %v722 = vunpack.c.l.bf16 %v690
      %v723 = vunpack.c.l.bf16 %v691
      %v724 = vunpack.c.l.bf16 %v692
      %v725 = vunpack.c.l.bf16 %v693
      %v726 = vunpack.c.l.bf16 %v694
      %v727 = vunpack.c.l.bf16 %v695
      %v728 = vunpack.c.l.bf16 %v696
      %v729 = vunpack.c.l.bf16 %v697
      %v730 = vunpack.c.l.bf16 %v698
      %v731 = vunpack.c.l.bf16 %v699
      %v732 = vunpack.c.l.bf16 %v700
      %v733 = vunpack.c.l.bf16 %v701
      %v734 = vunpack.c.l.bf16 %v702
      %v735 = vunpack.c.l.bf16 %v703
      %v736 = vunpack.c.l.bf16 %v704
      %v737 = vunpack.c.l.bf16 %v605
      %v738 = vunpack.c.l.bf16 %v606
      %v739 = vmax.f32 %v705, %v611
      %v740 = vmax.f32 %v706, %v612
      %v741 = vmax.f32 %v707, %v613
      %v742 = vmax.f32 %v708, %v614
      %v743 = vmax.f32 %v709, %v615
      %v744 = vmax.f32 %v710, %v616
      %v745 = vmax.f32 %v711, %v617
      %v746 = vmax.f32 %v712, %v618
      %v747 = vmax.f32 %v713, %v619
      %v748 = vmax.f32 %v714, %v620
      %v749 = vmax.f32 %v715, %v621
      %v750 = vmax.f32 %v716, %v622
      %v751 = vmax.f32 %v717, %v623
      %v752 = vmax.f32 %v718, %v624
      %v753 = vmax.f32 %v719, %v625
      %v754 = vmax.f32 %v720, %v626
      %v755 = vmax.f32 %v721, %v627
      %v756 = vmax.f32 %v722, %v628
      %v757 = vmax.f32 %v723, %v629
      %v758 = vmax.f32 %v724, %v630
      %v759 = vmax.f32 %v725, %v631
      %v760 = vmax.f32 %v726, %v632
      %v761 = vmax.f32 %v727, %v633
      %v762 = vmax.f32 %v728, %v634
      %v763 = vmax.f32 %v729, %v635
      %v764 = vmax.f32 %v730, %v636
      %v765 = vmax.f32 %v731, %v637
      %v766 = vmax.f32 %v732, %v638
      %v767 = vmax.f32 %v733, %v639
      %v768 = vmax.f32 %v734, %v640
      %v769 = vmax.f32 %v735, %v737
      %v770 = vmax.f32 %v736, %v738
      %v771 = vpack.c.bf16 %v739, %v739
      %v772 = vpack.c.bf16 %v740, %v740
      %v773 = vpack.c.bf16 %v741, %v741
      %v774 = vpack.c.bf16 %v742, %v742
      %v775 = vpack.c.bf16 %v743, %v743
      %v776 = vpack.c.bf16 %v744, %v744
      %v777 = vpack.c.bf16 %v745, %v745
      %v778 = vpack.c.bf16 %v746, %v746
      %v779 = vpack.c.bf16 %v747, %v747
      %v780 = vpack.c.bf16 %v748, %v748
      %v781 = vpack.c.bf16 %v749, %v749
      %v782 = vpack.c.bf16 %v750, %v750
      %v783 = vpack.c.bf16 %v751, %v751
      %v784 = vpack.c.bf16 %v752, %v752
      %v785 = vpack.c.bf16 %v753, %v753
      %v786 = vpack.c.bf16 %v754, %v754
      %v787 = vpack.c.bf16 %v755, %v755
      %v788 = vpack.c.bf16 %v756, %v756
      %v789 = vpack.c.bf16 %v757, %v757
      %v790 = vpack.c.bf16 %v758, %v758
      %v791 = vpack.c.bf16 %v759, %v759
      %v792 = vpack.c.bf16 %v760, %v760
      %v793 = vpack.c.bf16 %v761, %v761
      %v794 = vpack.c.bf16 %v762, %v762
      %v795 = vpack.c.bf16 %v763, %v763
      %v796 = vpack.c.bf16 %v764, %v764
      %v797 = vpack.c.bf16 %v765, %v765
      %v798 = vpack.c.bf16 %v766, %v766
      %v799 = vpack.c.bf16 %v767, %v767
      %v800 = vpack.c.bf16 %v768, %v768
      %v801 = vpack.c.bf16 %v769, %v769
      %v802 = vpack.c.bf16 %v770, %v770
      %803 = vst [vmem:[%s210] sm:$0xf] %v771
      %804 = vst [vmem:[%s210 + $0x4] sm:$0xf] %v772
      %805 = vst [vmem:[%s210 + $0x8] sm:$0xf] %v773
      %806 = vst [vmem:[%s210 + $0xc] sm:$0xf] %v774
      %807 = vst [vmem:[%s210 + $0x10] sm:$0xf] %v775
      %808 = vst [vmem:[%s210 + $0x14] sm:$0xf] %v776
      %809 = vst [vmem:[%s210 + $0x18] sm:$0xf] %v777
      %810 = vst [vmem:[%s210 + $0x1c] sm:$0xf] %v778
      %811 = vst [vmem:[%s210 + $0x20] sm:$0xf] %v779
      %812 = vst [vmem:[%s210 + $0x24] sm:$0xf] %v780
      %813 = vst [vmem:[%s210 + $0x28] sm:$0xf] %v781
      %814 = vst [vmem:[%s210 + $0x2c] sm:$0xf] %v782
      %815 = vst [vmem:[%s210 + $0x30] sm:$0xf] %v783
      %816 = vst [vmem:[%s210 + $0x34] sm:$0xf] %v784
      %817 = vst [vmem:[%s210 + $0x38] sm:$0xf] %v785
      %818 = vst [vmem:[%s210 + $0x3c] sm:$0xf] %v786
      %819 = vst [vmem:[%s210 + $0x40] sm:$0xf] %v787
      %820 = vst [vmem:[%s210 + $0x44] sm:$0xf] %v788
      %821 = vst [vmem:[%s210 + $0x48] sm:$0xf] %v789
      %822 = vst [vmem:[%s210 + $0x4c] sm:$0xf] %v790
      %823 = vst [vmem:[%s210 + $0x50] sm:$0xf] %v791
      %824 = vst [vmem:[%s210 + $0x54] sm:$0xf] %v792
      %825 = vst [vmem:[%s210 + $0x58] sm:$0xf] %v793
      %826 = vst [vmem:[%s210 + $0x5c] sm:$0xf] %v794
      %827 = vst [vmem:[%s210 + $0x60] sm:$0xf] %v795
      %828 = vst [vmem:[%s210 + $0x64] sm:$0xf] %v796
      %829 = vst [vmem:[%s210 + $0x68] sm:$0xf] %v797
      %830 = vst [vmem:[%s210 + $0x6c] sm:$0xf] %v798
      %831 = vst [vmem:[%s210 + $0x70] sm:$0xf] %v799
      %832 = vst [vmem:[%s210 + $0x74] sm:$0xf] %v800
      %833 = vst [vmem:[%s210 + $0x78] sm:$0xf] %v801
      %834 = vst [vmem:[%s210 + $0x7c] sm:$0xf] %v802
      %p835 = scmp.lt.s32.totalorder %s14, 1
      %s836 = scalar_select %p835, %s14, 1
      %s837 = smul.addr %s836, 32
      %s838 = smul.addr %s837, 4
      %s839 = scalar_lea.vmem %s3, %s838
      // Predicated region
      $region33: #{_stem_forward.3} parent=31 // pred_check
        %p840 = pneg %p110
      $region34: #{_stem_forward.3} parent=31 // pred_check_branch
        %842 = sbr.rel (%p840) target = $region36
      $region35: #{_stem_forward.3} parent=31 // pred_region
        _
      $region36: #{_stem_forward.3} parent=31 // pred_fallthru
        _
    $region32: #{_stem_forward.3} parent=5 // pred_fallthru
      _
    %p843 = scmp.le.s32.totalorder 2, %s9
    // Predicated region
    $region37: #{_stem_forward.3} parent=5 // pred_check
      %p844 = pneg %p843
    $region38: #{_stem_forward.3} parent=5 // pred_check_branch
      %846 = sbr.rel (%p844) target = $region40
    $region39: #{_stem_forward.3} parent=5 // pred_region
      %s847 = ssub.s32 %s9, 2
      // Predicated region
      $region41: #{_stem_forward.3} parent=39 // pred_check
        %p848 = pneg %p116
      $region42: #{_stem_forward.3} parent=39 // pred_check_branch
        %850 = sbr.rel (%p848) target = $region44
      $region43: #{_stem_forward.3} parent=39 // pred_region
        %p851 = scmp.lt.s32.totalorder %s15, 1
        %s852 = scalar_select %p851, %s15, 1
        %s853 = smul.addr %s852, 32
        %s854 = smul.addr %s853, 4
        %s855 = scalar_lea.vmem %s3, %s854
      $region44: #{_stem_forward.3} parent=39 // pred_fallthru
        _
    $region40: #{_stem_forward.3} parent=5 // pred_fallthru
      _
  $region6: #{_stem_forward.3} parent=0 // loop_footer
    %s13 = sadd.s32 1, %s9
  $region7: #{_stem_forward.3} parent=0 // loop_footer_branch
    %8 = sbr.rel target = $region3
  $region8: #{_stem_forward.3} parent=0 // loop_exit
    _

// kernel: _stem_forward.2
$region0: #{_stem_forward.2}
  #allocation0 [shape = 'u32[]', space=smem, size = 0x4, offset = 0x4, fixed_abs, tag = 'smem constant byte address 0x4 - core index']
  #allocation1 [shape = 'u32[72,128]{1,0:T(1,128)}', space=vmem, size = 0x9000, scoped, tag = 'internal scratch']
  #allocation2 [shape = 'f32[512,128]{1,0:T(8,128)}', space=vmem, size = 0x40000, scoped, tag = 'scratch operand']
  %s0 = inlined_call_operand.vmem [shape: bf16[512,147], index: 0, kind: input, shape index: {}]
  %s1 = inlined_call_operand.vmem [shape: bf16[147,128], index: 1, kind: input, shape index: {}]
  %s2 = inlined_call_operand.vmem [shape: f32[1,128], index: 2, kind: input, shape index: {}]
  %s3 = inlined_call_operand.vmem [shape: f32[1,128], index: 3, kind: input, shape index: {}]
  %s4 = inlined_call_operand.vmem [shape: bf16[512,128], index: 4, kind: output, shape index: {}]
  %s5 = sld [smem:[#allocation0]]
  $region34: #{_stem_forward.2} parent=0
    _
  %s7 = ssub.s32 1, %s5
  %s8 = scalar_select 0, %s7, %s5
  // Predicated region
  $region2: #{_stem_forward.2} parent=0 // pred_check
    _
  $region3: #{_stem_forward.2} parent=0 // pred_check_branch
    %10 = sbr.rel (0) target = $region5
  $region4: #{_stem_forward.2} parent=0 // pred_region
    _
  $region5: #{_stem_forward.2} parent=0 // pred_fallthru
    _
  // Predicated region
  $region6: #{_stem_forward.2} parent=0 // pred_check
    _
  $region7: #{_stem_forward.2} parent=0 // pred_check_branch
    %12 = sbr.rel (0) target = $region9
  $region8: #{_stem_forward.2} parent=0 // pred_region
    _
  $region9: #{_stem_forward.2} parent=0 // pred_fallthru
    _
  // Predicated region
  $region10: #{_stem_forward.2} parent=0 // pred_check
    _
  $region11: #{_stem_forward.2} parent=0 // pred_check_branch
    %14 = sbr.rel (0) target = $region13
  $region12: #{_stem_forward.2} parent=0 // pred_region
    _
  $region13: #{_stem_forward.2} parent=0 // pred_fallthru
    _
  // Predicated region
  $region14: #{_stem_forward.2} parent=0 // pred_check
    _
  $region15: #{_stem_forward.2} parent=0 // pred_check_branch
    %16 = sbr.rel (0) target = $region17
  $region16: #{_stem_forward.2} parent=0 // pred_region
    _
  $region17: #{_stem_forward.2} parent=0 // pred_fallthru
    _
  %p18 = scmp.eq.s32.totalorder 0, 0
  // Predicated region
  $region18: #{_stem_forward.2} parent=0 // pred_check
    %p19 = pneg %p18
  $region19: #{_stem_forward.2} parent=0 // pred_check_branch
    %21 = sbr.rel (%p19) target = $region21
  $region20: #{_stem_forward.2} parent=0 // pred_region
    %22 = vst [vmem:[#allocation2] sm:$0xff] 0.0
    %23 = vst [vmem:[#allocation2 + $0x8] sm:$0xff] 0.0
    %24 = vst [vmem:[#allocation2 + $0x10] sm:$0xff] 0.0
    %25 = vst [vmem:[#allocation2 + $0x18] sm:$0xff] 0.0
    %26 = vst [vmem:[#allocation2 + $0x20] sm:$0xff] 0.0
    %27 = vst [vmem:[#allocation2 + $0x28] sm:$0xff] 0.0
    %28 = vst [vmem:[#allocation2 + $0x30] sm:$0xff] 0.0
    %29 = vst [vmem:[#allocation2 + $0x38] sm:$0xff] 0.0
    %30 = vst [vmem:[#allocation2 + $0x40] sm:$0xff] 0.0
    %31 = vst [vmem:[#allocation2 + $0x48] sm:$0xff] 0.0
    %32 = vst [vmem:[#allocation2 + $0x50] sm:$0xff] 0.0
    %33 = vst [vmem:[#allocation2 + $0x58] sm:$0xff] 0.0
    %34 = vst [vmem:[#allocation2 + $0x60] sm:$0xff] 0.0
    %35 = vst [vmem:[#allocation2 + $0x68] sm:$0xff] 0.0
    %36 = vst [vmem:[#allocation2 + $0x70] sm:$0xff] 0.0
    %37 = vst [vmem:[#allocation2 + $0x78] sm:$0xff] 0.0
    %38 = vst [vmem:[#allocation2 + $0x80] sm:$0xff] 0.0
    %39 = vst [vmem:[#allocation2 + $0x88] sm:$0xff] 0.0
    %40 = vst [vmem:[#allocation2 + $0x90] sm:$0xff] 0.0
    %41 = vst [vmem:[#allocation2 + $0x98] sm:$0xff] 0.0
    %42 = vst [vmem:[#allocation2 + $0xa0] sm:$0xff] 0.0
    %43 = vst [vmem:[#allocation2 + $0xa8] sm:$0xff] 0.0
    %44 = vst [vmem:[#allocation2 + $0xb0] sm:$0xff] 0.0
    %45 = vst [vmem:[#allocation2 + $0xb8] sm:$0xff] 0.0
    %46 = vst [vmem:[#allocation2 + $0xc0] sm:$0xff] 0.0
    %47 = vst [vmem:[#allocation2 + $0xc8] sm:$0xff] 0.0
    %48 = vst [vmem:[#allocation2 + $0xd0] sm:$0xff] 0.0
    %49 = vst [vmem:[#allocation2 + $0xd8] sm:$0xff] 0.0
    %50 = vst [vmem:[#allocation2 + $0xe0] sm:$0xff] 0.0
    %51 = vst [vmem:[#allocation2 + $0xe8] sm:$0xff] 0.0
    %52 = vst [vmem:[#allocation2 + $0xf0] sm:$0xff] 0.0
    %53 = vst [vmem:[#allocation2 + $0xf8] sm:$0xff] 0.0
    %54 = vst [vmem:[#allocation2 + $0x100] sm:$0xff] 0.0
    %55 = vst [vmem:[#allocation2 + $0x108] sm:$0xff] 0.0
    %56 = vst [vmem:[#allocation2 + $0x110] sm:$0xff] 0.0
    %57 = vst [vmem:[#allocation2 + $0x118] sm:$0xff] 0.0
    %58 = vst [vmem:[#allocation2 + $0x120] sm:$0xff] 0.0
    %59 = vst [vmem:[#allocation2 + $0x128] sm:$0xff] 0.0
    %60 = vst [vmem:[#allocation2 + $0x130] sm:$0xff] 0.0
    %61 = vst [vmem:[#allocation2 + $0x138] sm:$0xff] 0.0
    %62 = vst [vmem:[#allocation2 + $0x140] sm:$0xff] 0.0
    %63 = vst [vmem:[#allocation2 + $0x148] sm:$0xff] 0.0
    %64 = vst [vmem:[#allocation2 + $0x150] sm:$0xff] 0.0
    %65 = vst [vmem:[#allocation2 + $0x158] sm:$0xff] 0.0
    %66 = vst [vmem:[#allocation2 + $0x160] sm:$0xff] 0.0
    %67 = vst [vmem:[#allocation2 + $0x168] sm:$0xff] 0.0
    %68 = vst [vmem:[#allocation2 + $0x170] sm:$0xff] 0.0
    %69 = vst [vmem:[#allocation2 + $0x178] sm:$0xff] 0.0
    %70 = vst [vmem:[#allocation2 + $0x180] sm:$0xff] 0.0
    %71 = vst [vmem:[#allocation2 + $0x188] sm:$0xff] 0.0
    %72 = vst [vmem:[#allocation2 + $0x190] sm:$0xff] 0.0
    %73 = vst [vmem:[#allocation2 + $0x198] sm:$0xff] 0.0
    %74 = vst [vmem:[#allocation2 + $0x1a0] sm:$0xff] 0.0
    %75 = vst [vmem:[#allocation2 + $0x1a8] sm:$0xff] 0.0
    %76 = vst [vmem:[#allocation2 + $0x1b0] sm:$0xff] 0.0
    %77 = vst [vmem:[#allocation2 + $0x1b8] sm:$0xff] 0.0
    %78 = vst [vmem:[#allocation2 + $0x1c0] sm:$0xff] 0.0
    %79 = vst [vmem:[#allocation2 + $0x1c8] sm:$0xff] 0.0
    %80 = vst [vmem:[#allocation2 + $0x1d0] sm:$0xff] 0.0
    %81 = vst [vmem:[#allocation2 + $0x1d8] sm:$0xff] 0.0
    %82 = vst [vmem:[#allocation2 + $0x1e0] sm:$0xff] 0.0
    %83 = vst [vmem:[#allocation2 + $0x1e8] sm:$0xff] 0.0
    %84 = vst [vmem:[#allocation2 + $0x1f0] sm:$0xff] 0.0
    %85 = vst [vmem:[#allocation2 + $0x1f8] sm:$0xff] 0.0
  $region21: #{_stem_forward.2} parent=0 // pred_fallthru
    _
  %v86 = vld [vmem:[#allocation2] sm:$0xff]
  %v87 = vld [vmem:[#allocation2 + $0x8] sm:$0xff]
  %v88 = vld [vmem:[#allocation2 + $0x10] sm:$0xff]
  %v89 = vld [vmem:[#allocation2 + $0x18] sm:$0xff]
  %v90 = vld [vmem:[#allocation2 + $0x20] sm:$0xff]
  %v91 = vld [vmem:[#allocation2 + $0x28] sm:$0xff]
  %v92 = vld [vmem:[#allocation2 + $0x30] sm:$0xff]
  %v93 = vld [vmem:[#allocation2 + $0x38] sm:$0xff]
  %v94 = vld [vmem:[#allocation2 + $0x40] sm:$0xff]
  %v95 = vld [vmem:[#allocation2 + $0x48] sm:$0xff]
  %v96 = vld [vmem:[#allocation2 + $0x50] sm:$0xff]
  %v97 = vld [vmem:[#allocation2 + $0x58] sm:$0xff]
  %v98 = vld [vmem:[#allocation2 + $0x60] sm:$0xff]
  %v99 = vld [vmem:[#allocation2 + $0x68] sm:$0xff]
  %v100 = vld [vmem:[#allocation2 + $0x70] sm:$0xff]
  %v101 = vld [vmem:[#allocation2 + $0x78] sm:$0xff]
  %v102 = vld [vmem:[#allocation2 + $0x80] sm:$0xff]
  %v103 = vld [vmem:[#allocation2 + $0x88] sm:$0xff]
  %v104 = vld [vmem:[#allocation2 + $0x90] sm:$0xff]
  %v105 = vld [vmem:[#allocation2 + $0x98] sm:$0xff]
  %v106 = vld [vmem:[#allocation2 + $0xa0] sm:$0xff]
  %v107 = vld [vmem:[#allocation2 + $0xa8] sm:$0xff]
  %v108 = vld [vmem:[#allocation2 + $0xb0] sm:$0xff]
  %v109 = vld [vmem:[#allocation2 + $0xb8] sm:$0xff]
  %v110 = vld [vmem:[#allocation2 + $0xc0] sm:$0xff]
  %v111 = vld [vmem:[#allocation2 + $0xc8] sm:$0xff]
  %v112 = vld [vmem:[#allocation2 + $0xd0] sm:$0xff]
  %v113 = vld [vmem:[#allocation2 + $0xd8] sm:$0xff]
  %v114 = vld [vmem:[#allocation2 + $0xe0] sm:$0xff]
  %v115 = vld [vmem:[#allocation2 + $0xe8] sm:$0xff]
  %v116 = vld [vmem:[#allocation2 + $0xf0] sm:$0xff]
  %v117 = vld [vmem:[#allocation2 + $0xf8] sm:$0xff]
  %v118 = vld [vmem:[#allocation2 + $0x100] sm:$0xff]
  %v119 = vld [vmem:[#allocation2 + $0x108] sm:$0xff]
  %v120 = vld [vmem:[#allocation2 + $0x110] sm:$0xff]
  %v121 = vld [vmem:[#allocation2 + $0x118] sm:$0xff]
  %v122 = vld [vmem:[#allocation2 + $0x120] sm:$0xff]
  %v123 = vld [vmem:[#allocation2 + $0x128] sm:$0xff]
  %v124 = vld [vmem:[#allocation2 + $0x130] sm:$0xff]
  %v125 = vld [vmem:[#allocation2 + $0x138] sm:$0xff]
  %v126 = vld [vmem:[#allocation2 + $0x140] sm:$0xff]
  %v127 = vld [vmem:[#allocation2 + $0x148] sm:$0xff]
  %v128 = vld [vmem:[#allocation2 + $0x150] sm:$0xff]
  %v129 = vld [vmem:[#allocation2 + $0x158] sm:$0xff]
  %v130 = vld [vmem:[#allocation2 + $0x160] sm:$0xff]
  %v131 = vld [vmem:[#allocation2 + $0x168] sm:$0xff]
  %v132 = vld [vmem:[#allocation2 + $0x170] sm:$0xff]
  %v133 = vld [vmem:[#allocation2 + $0x178] sm:$0xff]
  %v134 = vld [vmem:[#allocation2 + $0x180] sm:$0xff]
  %v135 = vld [vmem:[#allocation2 + $0x188] sm:$0xff]
  %v136 = vld [vmem:[#allocation2 + $0x190] sm:$0xff]
  %v137 = vld [vmem:[#allocation2 + $0x198] sm:$0xff]
  %v138 = vld [vmem:[#allocation2 + $0x1a0] sm:$0xff]
  %v139 = vld [vmem:[#allocation2 + $0x1a8] sm:$0xff]
  %v140 = vld [vmem:[#allocation2 + $0x1b0] sm:$0xff]
  %v141 = vld [vmem:[#allocation2 + $0x1b8] sm:$0xff]
  %v142 = vld [vmem:[#allocation2 + $0x1c0] sm:$0xff]
  %v143 = vld [vmem:[#allocation2 + $0x1c8] sm:$0xff]
  %v144 = vld [vmem:[#allocation2 + $0x1d0] sm:$0xff]
  %v145 = vld [vmem:[#allocation2 + $0x1d8] sm:$0xff]
  %v146 = vld [vmem:[#allocation2 + $0x1e0] sm:$0xff]
  %v147 = vld [vmem:[#allocation2 + $0x1e8] sm:$0xff]
  %v148 = vld [vmem:[#allocation2 + $0x1f0] sm:$0xff]
  %v149 = vld [vmem:[#allocation2 + $0x1f8] sm:$0xff]
  %v150 = vld [vmem:[%s0] sm:$0xff]
  %v151 = vld [vmem:[%s0 + $0x8] sm:$0xff]
  %v152 = vld [vmem:[%s0 + $0x10] sm:$0xff]
  %v153 = vld [vmem:[%s0 + $0x18] sm:$0xff]
  %v154 = vld [vmem:[%s0 + $0x20] sm:$0xff]
  %v155 = vld [vmem:[%s0 + $0x28] sm:$0xff]
  %v156 = vld [vmem:[%s0 + $0x30] sm:$0xff]
  %v157 = vld [vmem:[%s0 + $0x38] sm:$0xff]
  %v158 = vld [vmem:[%s0 + $0x40] sm:$0xff]
  %v159 = vld [vmem:[%s0 + $0x48] sm:$0xff]
  %v160 = vld [vmem:[%s0 + $0x50] sm:$0xff]
  %v161 = vld [vmem:[%s0 + $0x58] sm:$0xff]
  %v162 = vld [vmem:[%s0 + $0x60] sm:$0xff]
  %v163 = vld [vmem:[%s0 + $0x68] sm:$0xff]
  %v164 = vld [vmem:[%s0 + $0x70] sm:$0xff]
  %v165 = vld [vmem:[%s0 + $0x78] sm:$0xff]
  %v166 = vld [vmem:[%s0 + $0x80] sm:$0xff]
  %v167 = vld [vmem:[%s0 + $0x88] sm:$0xff]
  %v168 = vld [vmem:[%s0 + $0x90] sm:$0xff]
  %v169 = vld [vmem:[%s0 + $0x98] sm:$0xff]
  %v170 = vld [vmem:[%s0 + $0xa0] sm:$0xff]
  %v171 = vld [vmem:[%s0 + $0xa8] sm:$0xff]
  %v172 = vld [vmem:[%s0 + $0xb0] sm:$0xff]
  %v173 = vld [vmem:[%s0 + $0xb8] sm:$0xff]
  %v174 = vld [vmem:[%s0 + $0xc0] sm:$0xff]
  %v175 = vld [vmem:[%s0 + $0xc8] sm:$0xff]
  %v176 = vld [vmem:[%s0 + $0xd0] sm:$0xff]
  %v177 = vld [vmem:[%s0 + $0xd8] sm:$0xff]
  %v178 = vld [vmem:[%s0 + $0xe0] sm:$0xff]
  %v179 = vld [vmem:[%s0 + $0xe8] sm:$0xff]
  %v180 = vld [vmem:[%s0 + $0xf0] sm:$0xff]
  %v181 = vld [vmem:[%s0 + $0xf8] sm:$0xff]
  %v182 = vld [vmem:[%s0 + $0x100] sm:$0xff]
  %v183 = vld [vmem:[%s0 + $0x108] sm:$0xff]
  %v184 = vld [vmem:[%s0 + $0x110] sm:$0xff]
  %v185 = vld [vmem:[%s0 + $0x118] sm:$0xff]
  %v186 = vld [vmem:[%s0 + $0x120] sm:$0xff]
  %v187 = vld [vmem:[%s0 + $0x128] sm:$0xff]
  %v188 = vld [vmem:[%s0 + $0x130] sm:$0xff]
  %v189 = vld [vmem:[%s0 + $0x138] sm:$0xff]
  %v190 = vld [vmem:[%s0 + $0x140] sm:$0xff]
  %v191 = vld [vmem:[%s0 + $0x148] sm:$0xff]
  %v192 = vld [vmem:[%s0 + $0x150] sm:$0xff]
  %v193 = vld [vmem:[%s0 + $0x158] sm:$0xff]
  %v194 = vld [vmem:[%s0 + $0x160] sm:$0xff]
  %v195 = vld [vmem:[%s0 + $0x168] sm:$0xff]
  %v196 = vld [vmem:[%s0 + $0x170] sm:$0xff]
  %v197 = vld [vmem:[%s0 + $0x178] sm:$0xff]
  %v198 = vld [vmem:[%s0 + $0x180] sm:$0xff]
  %v199 = vld [vmem:[%s0 + $0x188] sm:$0xff]
  %v200 = vld [vmem:[%s0 + $0x190] sm:$0xff]
  %v201 = vld [vmem:[%s0 + $0x198] sm:$0xff]
  %v202 = vld [vmem:[%s0 + $0x1a0] sm:$0xff]
  %v203 = vld [vmem:[%s0 + $0x1a8] sm:$0xff]
  %v204 = vld [vmem:[%s0 + $0x1b0] sm:$0xff]
  %v205 = vld [vmem:[%s0 + $0x1b8] sm:$0xff]
  %v206 = vld [vmem:[%s0 + $0x1c0] sm:$0xff]
  %v207 = vld [vmem:[%s0 + $0x1c8] sm:$0xff]
  %v208 = vld [vmem:[%s0 + $0x1d0] sm:$0xff]
  %v209 = vld [vmem:[%s0 + $0x1d8] sm:$0xff]
  %v210 = vld [vmem:[%s0 + $0x1e0] sm:$0xff]
  %v211 = vld [vmem:[%s0 + $0x1e8] sm:$0xff]
  %v212 = vld [vmem:[%s0 + $0x1f0] sm:$0xff]
  %v213 = vld [vmem:[%s0 + $0x1f8] sm:$0xff]
  %v214 = vld [vmem:[%s1] sm:$0xf]
  %v215 = vld [vmem:[%s1 + $0x4] sm:$0xf]
  %v216 = vld [vmem:[%s1 + $0x8] sm:$0xf]
  %v217 = vld [vmem:[%s1 + $0xc] sm:$0xf]
  %v218 = vld [vmem:[%s1 + $0x10] sm:$0xf]
  %v219 = vld [vmem:[%s1 + $0x14] sm:$0xf]
  %v220 = vld [vmem:[%s1 + $0x18] sm:$0xf]
  %v221 = vld [vmem:[%s1 + $0x1c] sm:$0xf]
  %v222 = vld [vmem:[%s1 + $0x20] sm:$0xf]
  %v223 = vld [vmem:[%s1 + $0x24] sm:$0xf]
  %v224 = vld [vmem:[%s1 + $0x28] sm:$0xf]
  %v225 = vld [vmem:[%s1 + $0x2c] sm:$0xf]
  %v226 = vld [vmem:[%s1 + $0x30] sm:$0xf]
  %v227 = vld [vmem:[%s1 + $0x34] sm:$0xf]
  %v228 = vld [vmem:[%s1 + $0x38] sm:$0xf]
  %v229 = vld [vmem:[%s1 + $0x3c] sm:$0xf]
  %v230 = vld [vmem:[%s1 + $0x40] sm:$0xf]
  %v231 = vld [vmem:[%s1 + $0x44] sm:$0xf]
  %v232 = vld [vmem:[%s1 + $0x48] sm:$0x3]
  %v297 = vunpack.c.l.b16 %v150
  %v298 = vunpack.c.h.b16 %v150
  %v299 = vunpack.c.l.b16 %v151
  %v300 = vunpack.c.h.b16 %v151
  %v301 = vunpack.c.l.b16 %v152
  %v302 = vunpack.c.h.b16 %v152
  %v303 = vunpack.c.l.b16 %v153
  %v304 = vunpack.c.h.b16 %v153
  %v305 = vunpack.c.l.b16 %v154
  %v306 = vunpack.c.h.b16 %v154
  %v307 = vunpack.c.l.b16 %v155
  %v308 = vunpack.c.h.b16 %v155
  %v309 = vunpack.c.l.b16 %v156
  %v310 = vunpack.c.h.b16 %v156
  %v311 = vunpack.c.l.b16 %v157
  %v312 = vunpack.c.h.b16 %v157
  %v313 = vunpack.c.l.b16 %v158
  %v314 = vunpack.c.h.b16 %v158
  %v315 = vunpack.c.l.b16 %v159
  %v316 = vunpack.c.h.b16 %v159
  %v317 = vunpack.c.l.b16 %v160
  %v318 = vunpack.c.h.b16 %v160
  %v319 = vunpack.c.l.b16 %v161
  %v320 = vunpack.c.h.b16 %v161
  %v321 = vunpack.c.l.b16 %v162
  %v322 = vunpack.c.h.b16 %v162
  %v323 = vunpack.c.l.b16 %v163
  %v324 = vunpack.c.h.b16 %v163
  %v325 = vunpack.c.l.b16 %v164
  %v326 = vunpack.c.h.b16 %v164
  %v327 = vunpack.c.l.b16 %v165
  %v328 = vunpack.c.h.b16 %v165
  %v329 = vunpack.c.l.b16 %v166
  %v330 = vunpack.c.h.b16 %v166
  %v331 = vunpack.c.l.b16 %v167
  %v332 = vunpack.c.h.b16 %v167
  %v333 = vunpack.c.l.b16 %v168
  %v334 = vunpack.c.h.b16 %v168
  %v335 = vunpack.c.l.b16 %v169
  %v336 = vunpack.c.h.b16 %v169
  %v337 = vunpack.c.l.b16 %v170
  %v338 = vunpack.c.h.b16 %v170
  %v339 = vunpack.c.l.b16 %v171
  %v340 = vunpack.c.h.b16 %v171
  %v341 = vunpack.c.l.b16 %v172
  %v342 = vunpack.c.h.b16 %v172
  %v343 = vunpack.c.l.b16 %v173
  %v344 = vunpack.c.h.b16 %v173
  %v345 = vunpack.c.l.b16 %v174
  %v346 = vunpack.c.h.b16 %v174
  %v347 = vunpack.c.l.b16 %v175
  %v348 = vunpack.c.h.b16 %v175
  %v349 = vunpack.c.l.b16 %v176
  %v350 = vunpack.c.h.b16 %v176
  %v351 = vunpack.c.l.b16 %v177
  %v352 = vunpack.c.h.b16 %v177
  %v353 = vunpack.c.l.b16 %v178
  %v354 = vunpack.c.h.b16 %v178
  %v355 = vunpack.c.l.b16 %v179
  %v356 = vunpack.c.h.b16 %v179
  %v357 = vunpack.c.l.b16 %v180
  %v358 = vunpack.c.h.b16 %v180
  %v359 = vunpack.c.l.b16 %v181
  %v360 = vunpack.c.h.b16 %v181
  %v361 = vunpack.c.l.b16 %v182
  %v362 = vunpack.c.h.b16 %v182
  %v363 = vunpack.c.l.b16 %v183
  %v364 = vunpack.c.h.b16 %v183
  %v365 = vunpack.c.l.b16 %v184
  %v366 = vunpack.c.h.b16 %v184
  %v367 = vunpack.c.l.b16 %v185
  %v368 = vunpack.c.h.b16 %v185
  %v369 = vunpack.c.l.b16 %v186
  %v370 = vunpack.c.h.b16 %v186
  %v371 = vunpack.c.l.b16 %v187
  %v372 = vunpack.c.h.b16 %v187
  %v373 = vunpack.c.l.b16 %v188
  %v374 = vunpack.c.h.b16 %v188
  %v375 = vunpack.c.l.b16 %v189
  %v376 = vunpack.c.h.b16 %v189
  %v377 = vunpack.c.l.b16 %v190
  %v378 = vunpack.c.h.b16 %v190
  %v379 = vunpack.c.l.b16 %v191
  %v380 = vunpack.c.h.b16 %v191
  %v381 = vunpack.c.l.b16 %v192
  %v382 = vunpack.c.h.b16 %v192
  %v383 = vunpack.c.l.b16 %v193
  %v384 = vunpack.c.h.b16 %v193
  %v385 = vunpack.c.l.b16 %v194
  %v386 = vunpack.c.h.b16 %v194
  %v387 = vunpack.c.l.b16 %v195
  %v388 = vunpack.c.h.b16 %v195
  %v389 = vunpack.c.l.b16 %v196
  %v390 = vunpack.c.h.b16 %v196
  %v391 = vunpack.c.l.b16 %v197
  %v392 = vunpack.c.h.b16 %v197
  %v393 = vunpack.c.l.b16 %v198
  %v394 = vunpack.c.h.b16 %v198
  %v395 = vunpack.c.l.b16 %v199
  %v396 = vunpack.c.h.b16 %v199
  %v397 = vunpack.c.l.b16 %v200
  %v398 = vunpack.c.h.b16 %v200
  %v399 = vunpack.c.l.b16 %v201
  %v400 = vunpack.c.h.b16 %v201
  %v401 = vunpack.c.l.b16 %v202
  %v402 = vunpack.c.h.b16 %v202
  %v403 = vunpack.c.l.b16 %v203
  %v404 = vunpack.c.h.b16 %v203
  %v405 = vunpack.c.l.b16 %v204
  %v406 = vunpack.c.h.b16 %v204
  %v407 = vunpack.c.l.b16 %v205
  %v408 = vunpack.c.h.b16 %v205
  %v409 = vunpack.c.l.b16 %v206
  %v410 = vunpack.c.h.b16 %v206
  %v411 = vunpack.c.l.b16 %v207
  %v412 = vunpack.c.h.b16 %v207
  %v413 = vunpack.c.l.b16 %v208
  %v414 = vunpack.c.h.b16 %v208
  %v415 = vunpack.c.l.b16 %v209
  %v416 = vunpack.c.h.b16 %v209
  %v417 = vunpack.c.l.b16 %v210
  %v418 = vunpack.c.h.b16 %v210
  %v419 = vunpack.c.l.b16 %v211
  %v420 = vunpack.c.h.b16 %v211
  %v421 = vunpack.c.l.b16 %v212
  %v422 = vunpack.c.h.b16 %v212
  %v423 = vunpack.c.l.b16 %v213
  %v424 = vunpack.c.h.b16 %v213
  %v425 = vpack.c.b16 %v299, %v297
  %v426 = vpack.c.b16 %v300, %v298
  %v427 = vpack.c.b16 %v303, %v301
  %v428 = vpack.c.b16 %v304, %v302
  %v429 = vpack.c.b16 %v307, %v305
  %v430 = vpack.c.b16 %v308, %v306
  %v431 = vpack.c.b16 %v311, %v309
  %v432 = vpack.c.b16 %v312, %v310
  %v433 = vpack.c.b16 %v315, %v313
  %v434 = vpack.c.b16 %v316, %v314
  %v435 = vpack.c.b16 %v319, %v317
  %v436 = vpack.c.b16 %v320, %v318
  %v437 = vpack.c.b16 %v323, %v321
  %v438 = vpack.c.b16 %v324, %v322
  %v439 = vpack.c.b16 %v327, %v325
  %v440 = vpack.c.b16 %v328, %v326
  %v441 = vpack.c.b16 %v331, %v329
  %v442 = vpack.c.b16 %v332, %v330
  %v443 = vpack.c.b16 %v335, %v333
  %v444 = vpack.c.b16 %v336, %v334
  %v445 = vpack.c.b16 %v339, %v337
  %v446 = vpack.c.b16 %v340, %v338
  %v447 = vpack.c.b16 %v343, %v341
  %v448 = vpack.c.b16 %v344, %v342
  %v449 = vpack.c.b16 %v347, %v345
  %v450 = vpack.c.b16 %v348, %v346
  %v451 = vpack.c.b16 %v351, %v349
  %v452 = vpack.c.b16 %v352, %v350
  %v453 = vpack.c.b16 %v355, %v353
  %v454 = vpack.c.b16 %v356, %v354
  %v455 = vpack.c.b16 %v359, %v357
  %v456 = vpack.c.b16 %v360, %v358
  %v457 = vpack.c.b16 %v363, %v361
  %v458 = vpack.c.b16 %v364, %v362
  %v459 = vpack.c.b16 %v367, %v365
  %v460 = vpack.c.b16 %v368, %v366
  %v461 = vpack.c.b16 %v371, %v369
  %v462 = vpack.c.b16 %v372, %v370
  %v463 = vpack.c.b16 %v375, %v373
  %v464 = vpack.c.b16 %v376, %v374
  %v465 = vpack.c.b16 %v379, %v377
  %v466 = vpack.c.b16 %v380, %v378
  %v467 = vpack.c.b16 %v383, %v381
  %v468 = vpack.c.b16 %v384, %v382
  %v469 = vpack.c.b16 %v387, %v385
  %v470 = vpack.c.b16 %v388, %v386
  %v471 = vpack.c.b16 %v391, %v389
  %v472 = vpack.c.b16 %v392, %v390
  %v473 = vpack.c.b16 %v395, %v393
  %v474 = vpack.c.b16 %v396, %v394
  %v475 = vpack.c.b16 %v399, %v397
  %v476 = vpack.c.b16 %v400, %v398
  %v477 = vpack.c.b16 %v403, %v401
  %v478 = vpack.c.b16 %v404, %v402
  %v479 = vpack.c.b16 %v407, %v405
  %v480 = vpack.c.b16 %v408, %v406
  %v481 = vpack.c.b16 %v411, %v409
  %v482 = vpack.c.b16 %v412, %v410
  %v483 = vpack.c.b16 %v415, %v413
  %v484 = vpack.c.b16 %v416, %v414
  %v485 = vpack.c.b16 %v419, %v417
  %v486 = vpack.c.b16 %v420, %v418
  %v487 = vpack.c.b16 %v423, %v421
  %v488 = vpack.c.b16 %v424, %v422
  %v540 = vunpack.c.l.b16 %v214
  %v541 = vunpack.c.l.b16 %v215
  %v542 = vunpack.c.l.b16 %v216
  %v543 = vunpack.c.l.b16 %v217
  %v544 = vunpack.c.l.b16 %v218
  %v545 = vunpack.c.l.b16 %v219
  %v546 = vunpack.c.l.b16 %v220
  %v547 = vunpack.c.l.b16 %v221
  %v548 = vunpack.c.l.b16 %v222
  %v549 = vunpack.c.l.b16 %v223
  %v550 = vunpack.c.l.b16 %v224
  %v551 = vunpack.c.l.b16 %v225
  %v552 = vunpack.c.l.b16 %v226
  %v553 = vunpack.c.l.b16 %v227
  %v554 = vunpack.c.l.b16 %v228
  %v555 = vunpack.c.l.b16 %v229
  %v556 = vunpack.c.l.b16 %v230
  %v557 = vunpack.c.l.b16 %v231
  %v558 = vunpack.c.l.b16 %v232
  %v559 = vpack.c.b16 %v541, %v540
  %v560 = vpack.c.b16 %v543, %v542
  %v561 = vpack.c.b16 %v545, %v544
  %v562 = vpack.c.b16 %v547, %v546
  %v563 = vpack.c.b16 %v549, %v548
  %v564 = vpack.c.b16 %v551, %v550
  %v565 = vpack.c.b16 %v553, %v552
  %v566 = vpack.c.b16 %v555, %v554
  %v567 = vpack.c.b16 %v557, %v556
  %v568 = vpack.c.b16 %v558, %v558
  %vm578 = vcmask 154624
  %v580 = vsel %vm578, %v426, 0
  %v583 = vsel %vm578, %v428, 0
  %v586 = vsel %vm578, %v430, 0
  %v589 = vsel %vm578, %v432, 0
  %v592 = vsel %vm578, %v434, 0
  %v595 = vsel %vm578, %v436, 0
  %v598 = vsel %vm578, %v438, 0
  %v601 = vsel %vm578, %v440, 0
  %v604 = vsel %vm578, %v442, 0
  %v607 = vsel %vm578, %v444, 0
  %v610 = vsel %vm578, %v446, 0
  %v613 = vsel %vm578, %v448, 0
  %v616 = vsel %vm578, %v450, 0
  %v619 = vsel %vm578, %v452, 0
  %v622 = vsel %vm578, %v454, 0
  %v625 = vsel %vm578, %v456, 0
  %v628 = vsel %vm578, %v458, 0
  %v631 = vsel %vm578, %v460, 0
  %v634 = vsel %vm578, %v462, 0
  %v637 = vsel %vm578, %v464, 0
  %v640 = vsel %vm578, %v466, 0
  %v643 = vsel %vm578, %v468, 0
  %v646 = vsel %vm578, %v470, 0
  %v649 = vsel %vm578, %v472, 0
  %v652 = vsel %vm578, %v474, 0
  %v655 = vsel %vm578, %v476, 0
  %v658 = vsel %vm578, %v478, 0
  %v661 = vsel %vm578, %v480, 0
  %v664 = vsel %vm578, %v482, 0
  %v667 = vsel %vm578, %v484, 0
  %v670 = vsel %vm578, %v486, 0
  %v673 = vsel %vm578, %v488, 0
  %vm675 = vcmask 1040384
  %vm676 = vcmask 1041408
  %v677 = vsel %vm675, 4294967295, 65535
  %v678 = vsel %vm676, %v677, 0
  %v680 = vand.u32 %v568, %v678
  %682 = vmatpush.bf16.msra.mxu0 %v566
  %683 = vmatpush.bf16.msra.mxu0 %v565
  %684 = vmatpush.bf16.msra.mxu0 %v564
  %685 = vmatpush.bf16.msra.mxu0 %v563
  %686 = vmatpush.bf16.msra.mxu0 %v562
  %687 = vmatpush.bf16.msra.mxu0 %v561
  %688 = vmatpush.bf16.msra.mxu0 %v560
  %689 = vmatpush.bf16.msra.mxu0 %v559
  %690 = vmatmul.bf16.gmra.mxu0 %v425
  %v691 = vpop.f32.mrf.mxu0
  %v692 = vadd.f32 0.0, %v691
  %v693 = vpop.f32.mrf.mxu0
  %v694 = vadd.f32 0.0, %v693
  %695 = vmatmul.bf16.gmra.mxu0 %v427
  %v696 = vpop.f32.mrf.mxu0
  %v697 = vadd.f32 0.0, %v696
  %v698 = vpop.f32.mrf.mxu0
  %v699 = vadd.f32 0.0, %v698
  %700 = vmatmul.bf16.gmra.mxu0 %v429
  %v701 = vpop.f32.mrf.mxu0
  %v702 = vadd.f32 0.0, %v701
  %v703 = vpop.f32.mrf.mxu0
  %v704 = vadd.f32 0.0, %v703
  %705 = vmatmul.bf16.gmra.mxu0 %v431
  %v706 = vpop.f32.mrf.mxu0
  %v707 = vadd.f32 0.0, %v706
  %v708 = vpop.f32.mrf.mxu0
  %v709 = vadd.f32 0.0, %v708
  %710 = vmatmul.bf16.gmra.mxu0 %v433
  %v711 = vpop.f32.mrf.mxu0
  %v712 = vadd.f32 0.0, %v711
  %v713 = vpop.f32.mrf.mxu0
  %v714 = vadd.f32 0.0, %v713
  %715 = vmatmul.bf16.gmra.mxu0 %v435
  %v716 = vpop.f32.mrf.mxu0
  %v717 = vadd.f32 0.0, %v716
  %v718 = vpop.f32.mrf.mxu0
  %v719 = vadd.f32 0.0, %v718
  %720 = vmatmul.bf16.gmra.mxu0 %v437
  %v721 = vpop.f32.mrf.mxu0
  %v722 = vadd.f32 0.0, %v721
  %v723 = vpop.f32.mrf.mxu0
  %v724 = vadd.f32 0.0, %v723
  %725 = vmatmul.bf16.gmra.mxu0 %v439
  %v726 = vpop.f32.mrf.mxu0
  %v727 = vadd.f32 0.0, %v726
  %v728 = vpop.f32.mrf.mxu0
  %v729 = vadd.f32 0.0, %v728
  %730 = vmatmul.bf16.gmra.mxu0 %v441
  %v731 = vpop.f32.mrf.mxu0
  %v732 = vadd.f32 0.0, %v731
  %v733 = vpop.f32.mrf.mxu0
  %v734 = vadd.f32 0.0, %v733
  %735 = vmatmul.bf16.gmra.mxu0 %v443
  %v736 = vpop.f32.mrf.mxu0
  %v737 = vadd.f32 0.0, %v736
  %v738 = vpop.f32.mrf.mxu0
  %v739 = vadd.f32 0.0, %v738
  %740 = vmatmul.bf16.gmra.mxu0 %v445
  %v741 = vpop.f32.mrf.mxu0
  %v742 = vadd.f32 0.0, %v741
  %v743 = vpop.f32.mrf.mxu0
  %v744 = vadd.f32 0.0, %v743
  %745 = vmatmul.bf16.gmra.mxu0 %v447
  %v746 = vpop.f32.mrf.mxu0
  %v747 = vadd.f32 0.0, %v746
  %v748 = vpop.f32.mrf.mxu0
  %v749 = vadd.f32 0.0, %v748
  %750 = vmatmul.bf16.gmra.mxu0 %v449
  %v751 = vpop.f32.mrf.mxu0
  %v752 = vadd.f32 0.0, %v751
  %v753 = vpop.f32.mrf.mxu0
  %v754 = vadd.f32 0.0, %v753
  %755 = vmatmul.bf16.gmra.mxu0 %v451
  %v756 = vpop.f32.mrf.mxu0
  %v757 = vadd.f32 0.0, %v756
  %v758 = vpop.f32.mrf.mxu0
  %v759 = vadd.f32 0.0, %v758
  %760 = vmatmul.bf16.gmra.mxu0 %v453
  %v761 = vpop.f32.mrf.mxu0
  %v762 = vadd.f32 0.0, %v761
  %v763 = vpop.f32.mrf.mxu0
  %v764 = vadd.f32 0.0, %v763
  %765 = vmatmul.bf16.gmra.mxu0 %v455
  %v766 = vpop.f32.mrf.mxu0
  %v767 = vadd.f32 0.0, %v766
  %v768 = vpop.f32.mrf.mxu0
  %v769 = vadd.f32 0.0, %v768
  %770 = vmatmul.bf16.gmra.mxu0 %v457
  %v771 = vpop.f32.mrf.mxu0
  %v772 = vadd.f32 0.0, %v771
  %v773 = vpop.f32.mrf.mxu0
  %v774 = vadd.f32 0.0, %v773
  %775 = vmatmul.bf16.gmra.mxu0 %v459
  %v776 = vpop.f32.mrf.mxu0
  %v777 = vadd.f32 0.0, %v776
  %v778 = vpop.f32.mrf.mxu0
  %v779 = vadd.f32 0.0, %v778
  %780 = vmatmul.bf16.gmra.mxu0 %v461
  %v781 = vpop.f32.mrf.mxu0
  %v782 = vadd.f32 0.0, %v781
  %v783 = vpop.f32.mrf.mxu0
  %v784 = vadd.f32 0.0, %v783
  %785 = vmatmul.bf16.gmra.mxu0 %v463
  %v786 = vpop.f32.mrf.mxu0
  %v787 = vadd.f32 0.0, %v786
  %v788 = vpop.f32.mrf.mxu0
  %v789 = vadd.f32 0.0, %v788
  %790 = vmatmul.bf16.gmra.mxu0 %v465
  %v791 = vpop.f32.mrf.mxu0
  %v792 = vadd.f32 0.0, %v791
  %v793 = vpop.f32.mrf.mxu0
  %v794 = vadd.f32 0.0, %v793
  %795 = vmatmul.bf16.gmra.mxu0 %v467
  %v796 = vpop.f32.mrf.mxu0
  %v797 = vadd.f32 0.0, %v796
  %v798 = vpop.f32.mrf.mxu0
  %v799 = vadd.f32 0.0, %v798
  %800 = vmatmul.bf16.gmra.mxu0 %v469
  %v801 = vpop.f32.mrf.mxu0
  %v802 = vadd.f32 0.0, %v801
  %v803 = vpop.f32.mrf.mxu0
  %v804 = vadd.f32 0.0, %v803
  %805 = vmatmul.bf16.gmra.mxu0 %v471
  %v806 = vpop.f32.mrf.mxu0
  %v807 = vadd.f32 0.0, %v806
  %v808 = vpop.f32.mrf.mxu0
  %v809 = vadd.f32 0.0, %v808
  %810 = vmatmul.bf16.gmra.mxu0 %v473
  %v811 = vpop.f32.mrf.mxu0
  %v812 = vadd.f32 0.0, %v811
  %v813 = vpop.f32.mrf.mxu0
  %v814 = vadd.f32 0.0, %v813
  %815 = vmatmul.bf16.gmra.mxu0 %v475
  %v816 = vpop.f32.mrf.mxu0
  %v817 = vadd.f32 0.0, %v816
  %v818 = vpop.f32.mrf.mxu0
  %v819 = vadd.f32 0.0, %v818
  %820 = vmatmul.bf16.gmra.mxu0 %v477
  %v821 = vpop.f32.mrf.mxu0
  %v822 = vadd.f32 0.0, %v821
  %v823 = vpop.f32.mrf.mxu0
  %v824 = vadd.f32 0.0, %v823
  %825 = vmatmul.bf16.gmra.mxu0 %v479
  %v826 = vpop.f32.mrf.mxu0
  %v827 = vadd.f32 0.0, %v826
  %v828 = vpop.f32.mrf.mxu0
  %v829 = vadd.f32 0.0, %v828
  %830 = vmatmul.bf16.gmra.mxu0 %v481
  %v831 = vpop.f32.mrf.mxu0
  %v832 = vadd.f32 0.0, %v831
  %v833 = vpop.f32.mrf.mxu0
  %v834 = vadd.f32 0.0, %v833
  %835 = vmatmul.bf16.gmra.mxu0 %v483
  %v836 = vpop.f32.mrf.mxu0
  %v837 = vadd.f32 0.0, %v836
  %v838 = vpop.f32.mrf.mxu0
  %v839 = vadd.f32 0.0, %v838
  %840 = vmatmul.bf16.gmra.mxu0 %v485
  %v841 = vpop.f32.mrf.mxu0
  %v842 = vadd.f32 0.0, %v841
  %v843 = vpop.f32.mrf.mxu0
  %v844 = vadd.f32 0.0, %v843
  %845 = vmatmul.bf16.gmra.mxu0 %v487
  %v846 = vpop.f32.mrf.mxu0
  %v847 = vadd.f32 0.0, %v846
  %v848 = vpop.f32.mrf.mxu0
  %v849 = vadd.f32 0.0, %v848
  %850 = vdwg.mxu0
  %851 = vmatpush.bf16.msra.mxu0 0
  %852 = vmatpush.bf16.msra.mxu0 0
  %853 = vmatpush.bf16.msra.mxu0 0
  %854 = vmatpush.bf16.msra.mxu0 0
  %855 = vmatpush.bf16.msra.mxu0 0
  %856 = vmatpush.bf16.msra.mxu0 0
  %857 = vmatpush.bf16.msra.mxu0 %v680
  %858 = vmatpush.bf16.msra.mxu0 %v567
  %859 = vmatmul.bf16.gmra.mxu0 %v580
  %v860 = vpop.f32.mrf.mxu0
  %v861 = vadd.f32 %v692, %v860
  %v862 = vpop.f32.mrf.mxu0
  %v863 = vadd.f32 %v694, %v862
  %864 = vmatmul.bf16.gmra.mxu0 %v583
  %v865 = vpop.f32.mrf.mxu0
  %v866 = vadd.f32 %v697, %v865
  %v867 = vpop.f32.mrf.mxu0
  %v868 = vadd.f32 %v699, %v867
  %869 = vmatmul.bf16.gmra.mxu0 %v586
  %v870 = vpop.f32.mrf.mxu0
  %v871 = vadd.f32 %v702, %v870
  %v872 = vpop.f32.mrf.mxu0
  %v873 = vadd.f32 %v704, %v872
  %874 = vmatmul.bf16.gmra.mxu0 %v589
  %v875 = vpop.f32.mrf.mxu0
  %v876 = vadd.f32 %v707, %v875
  %v877 = vpop.f32.mrf.mxu0
  %v878 = vadd.f32 %v709, %v877
  %879 = vmatmul.bf16.gmra.mxu0 %v592
  %v880 = vpop.f32.mrf.mxu0
  %v881 = vadd.f32 %v712, %v880
  %v882 = vpop.f32.mrf.mxu0
  %v883 = vadd.f32 %v714, %v882
  %884 = vmatmul.bf16.gmra.mxu0 %v595
  %v885 = vpop.f32.mrf.mxu0
  %v886 = vadd.f32 %v717, %v885
  %v887 = vpop.f32.mrf.mxu0
  %v888 = vadd.f32 %v719, %v887
  %889 = vmatmul.bf16.gmra.mxu0 %v598
  %v890 = vpop.f32.mrf.mxu0
  %v891 = vadd.f32 %v722, %v890
  %v892 = vpop.f32.mrf.mxu0
  %v893 = vadd.f32 %v724, %v892
  %894 = vmatmul.bf16.gmra.mxu0 %v601
  %v895 = vpop.f32.mrf.mxu0
  %v896 = vadd.f32 %v727, %v895
  %v897 = vpop.f32.mrf.mxu0
  %v898 = vadd.f32 %v729, %v897
  %899 = vmatmul.bf16.gmra.mxu0 %v604
  %v900 = vpop.f32.mrf.mxu0
  %v901 = vadd.f32 %v732, %v900
  %v902 = vpop.f32.mrf.mxu0
  %v903 = vadd.f32 %v734, %v902
  %904 = vmatmul.bf16.gmra.mxu0 %v607
  %v905 = vpop.f32.mrf.mxu0
  %v906 = vadd.f32 %v737, %v905
  %v907 = vpop.f32.mrf.mxu0
  %v908 = vadd.f32 %v739, %v907
  %909 = vmatmul.bf16.gmra.mxu0 %v610
  %v910 = vpop.f32.mrf.mxu0
  %v911 = vadd.f32 %v742, %v910
  %v912 = vpop.f32.mrf.mxu0
  %v913 = vadd.f32 %v744, %v912
  %914 = vmatmul.bf16.gmra.mxu0 %v613
  %v915 = vpop.f32.mrf.mxu0
  %v916 = vadd.f32 %v747, %v915
  %v917 = vpop.f32.mrf.mxu0
  %v918 = vadd.f32 %v749, %v917
  %919 = vmatmul.bf16.gmra.mxu0 %v616
  %v920 = vpop.f32.mrf.mxu0
  %v921 = vadd.f32 %v752, %v920
  %v922 = vpop.f32.mrf.mxu0
  %v923 = vadd.f32 %v754, %v922
  %924 = vmatmul.bf16.gmra.mxu0 %v619
  %v925 = vpop.f32.mrf.mxu0
  %v926 = vadd.f32 %v757, %v925
  %v927 = vpop.f32.mrf.mxu0
  %v928 = vadd.f32 %v759, %v927
  %929 = vmatmul.bf16.gmra.mxu0 %v622
  %v930 = vpop.f32.mrf.mxu0
  %v931 = vadd.f32 %v762, %v930
  %v932 = vpop.f32.mrf.mxu0
  %v933 = vadd.f32 %v764, %v932
  %934 = vmatmul.bf16.gmra.mxu0 %v625
  %v935 = vpop.f32.mrf.mxu0
  %v936 = vadd.f32 %v767, %v935
  %v937 = vpop.f32.mrf.mxu0
  %v938 = vadd.f32 %v769, %v937
  %939 = vmatmul.bf16.gmra.mxu0 %v628
  %v940 = vpop.f32.mrf.mxu0
  %v941 = vadd.f32 %v772, %v940
  %v942 = vpop.f32.mrf.mxu0
  %v943 = vadd.f32 %v774, %v942
  %944 = vmatmul.bf16.gmra.mxu0 %v631
  %v945 = vpop.f32.mrf.mxu0
  %v946 = vadd.f32 %v777, %v945
  %v947 = vpop.f32.mrf.mxu0
  %v948 = vadd.f32 %v779, %v947
  %949 = vmatmul.bf16.gmra.mxu0 %v634
  %v950 = vpop.f32.mrf.mxu0
  %v951 = vadd.f32 %v782, %v950
  %v952 = vpop.f32.mrf.mxu0
  %v953 = vadd.f32 %v784, %v952
  %954 = vmatmul.bf16.gmra.mxu0 %v637
  %v955 = vpop.f32.mrf.mxu0
  %v956 = vadd.f32 %v787, %v955
  %v957 = vpop.f32.mrf.mxu0
  %v958 = vadd.f32 %v789, %v957
  %959 = vmatmul.bf16.gmra.mxu0 %v640
  %v960 = vpop.f32.mrf.mxu0
  %v961 = vadd.f32 %v792, %v960
  %v962 = vpop.f32.mrf.mxu0
  %v963 = vadd.f32 %v794, %v962
  %964 = vmatmul.bf16.gmra.mxu0 %v643
  %v965 = vpop.f32.mrf.mxu0
  %v966 = vadd.f32 %v797, %v965
  %v967 = vpop.f32.mrf.mxu0
  %v968 = vadd.f32 %v799, %v967
  %969 = vmatmul.bf16.gmra.mxu0 %v646
  %v970 = vpop.f32.mrf.mxu0
  %v971 = vadd.f32 %v802, %v970
  %v972 = vpop.f32.mrf.mxu0
  %v973 = vadd.f32 %v804, %v972
  %974 = vmatmul.bf16.gmra.mxu0 %v649
  %v975 = vpop.f32.mrf.mxu0
  %v976 = vadd.f32 %v807, %v975
  %v977 = vpop.f32.mrf.mxu0
  %v978 = vadd.f32 %v809, %v977
  %979 = vmatmul.bf16.gmra.mxu0 %v652
  %v980 = vpop.f32.mrf.mxu0
  %v981 = vadd.f32 %v812, %v980
  %v982 = vpop.f32.mrf.mxu0
  %v983 = vadd.f32 %v814, %v982
  %984 = vmatmul.bf16.gmra.mxu0 %v655
  %v985 = vpop.f32.mrf.mxu0
  %v986 = vadd.f32 %v817, %v985
  %v987 = vpop.f32.mrf.mxu0
  %v988 = vadd.f32 %v819, %v987
  %989 = vmatmul.bf16.gmra.mxu0 %v658
  %v990 = vpop.f32.mrf.mxu0
  %v991 = vadd.f32 %v822, %v990
  %v992 = vpop.f32.mrf.mxu0
  %v993 = vadd.f32 %v824, %v992
  %994 = vmatmul.bf16.gmra.mxu0 %v661
  %v995 = vpop.f32.mrf.mxu0
  %v996 = vadd.f32 %v827, %v995
  %v997 = vpop.f32.mrf.mxu0
  %v998 = vadd.f32 %v829, %v997
  %999 = vmatmul.bf16.gmra.mxu0 %v664
  %v1000 = vpop.f32.mrf.mxu0
  %v1001 = vadd.f32 %v832, %v1000
  %v1002 = vpop.f32.mrf.mxu0
  %v1003 = vadd.f32 %v834, %v1002
  %1004 = vmatmul.bf16.gmra.mxu0 %v667
  %v1005 = vpop.f32.mrf.mxu0
  %v1006 = vadd.f32 %v837, %v1005
  %v1007 = vpop.f32.mrf.mxu0
  %v1008 = vadd.f32 %v839, %v1007
  %1009 = vmatmul.bf16.gmra.mxu0 %v670
  %v1010 = vpop.f32.mrf.mxu0
  %v1011 = vadd.f32 %v842, %v1010
  %v1012 = vpop.f32.mrf.mxu0
  %v1013 = vadd.f32 %v844, %v1012
  %1014 = vmatmul.bf16.gmra.mxu0 %v673
  %v1015 = vpop.f32.mrf.mxu0
  %v1016 = vadd.f32 %v847, %v1015
  %v1017 = vpop.f32.mrf.mxu0
  %v1018 = vadd.f32 %v849, %v1017
  %1019 = vdwg.mxu0
  %v1020 = vadd.f32 %v86, %v861
  %v1021 = vadd.f32 %v87, %v863
  %v1022 = vadd.f32 %v88, %v866
  %v1023 = vadd.f32 %v89, %v868
  %v1024 = vadd.f32 %v90, %v871
  %v1025 = vadd.f32 %v91, %v873
  %v1026 = vadd.f32 %v92, %v876
  %v1027 = vadd.f32 %v93, %v878
  %v1028 = vadd.f32 %v94, %v881
  %v1029 = vadd.f32 %v95, %v883
  %v1030 = vadd.f32 %v96, %v886
  %v1031 = vadd.f32 %v97, %v888
  %v1032 = vadd.f32 %v98, %v891
  %v1033 = vadd.f32 %v99, %v893
  %v1034 = vadd.f32 %v100, %v896
  %v1035 = vadd.f32 %v101, %v898
  %v1036 = vadd.f32 %v102, %v901
  %v1037 = vadd.f32 %v103, %v903
  %v1038 = vadd.f32 %v104, %v906
  %v1039 = vadd.f32 %v105, %v908
  %v1040 = vadd.f32 %v106, %v911
  %v1041 = vadd.f32 %v107, %v913
  %v1042 = vadd.f32 %v108, %v916
  %v1043 = vadd.f32 %v109, %v918
  %v1044 = vadd.f32 %v110, %v921
  %v1045 = vadd.f32 %v111, %v923
  %v1046 = vadd.f32 %v112, %v926
  %v1047 = vadd.f32 %v113, %v928
  %v1048 = vadd.f32 %v114, %v931
  %v1049 = vadd.f32 %v115, %v933
  %v1050 = vadd.f32 %v116, %v936
  %v1051 = vadd.f32 %v117, %v938
  %v1052 = vadd.f32 %v118, %v941
  %v1053 = vadd.f32 %v119, %v943
  %v1054 = vadd.f32 %v120, %v946
  %v1055 = vadd.f32 %v121, %v948
  %v1056 = vadd.f32 %v122, %v951
  %v1057 = vadd.f32 %v123, %v953
  %v1058 = vadd.f32 %v124, %v956
  %v1059 = vadd.f32 %v125, %v958
  %v1060 = vadd.f32 %v126, %v961
  %v1061 = vadd.f32 %v127, %v963
  %v1062 = vadd.f32 %v128, %v966
  %v1063 = vadd.f32 %v129, %v968
  %v1064 = vadd.f32 %v130, %v971
  %v1065 = vadd.f32 %v131, %v973
  %v1066 = vadd.f32 %v132, %v976
  %v1067 = vadd.f32 %v133, %v978
  %v1068 = vadd.f32 %v134, %v981
  %v1069 = vadd.f32 %v135, %v983
  %v1070 = vadd.f32 %v136, %v986
  %v1071 = vadd.f32 %v137, %v988
  %v1072 = vadd.f32 %v138, %v991
  %v1073 = vadd.f32 %v139, %v993
  %v1074 = vadd.f32 %v140, %v996
  %v1075 = vadd.f32 %v141, %v998
  %v1076 = vadd.f32 %v142, %v1001
  %v1077 = vadd.f32 %v143, %v1003
  %v1078 = vadd.f32 %v144, %v1006
  %v1079 = vadd.f32 %v145, %v1008
  %v1080 = vadd.f32 %v146, %v1011
  %v1081 = vadd.f32 %v147, %v1013
  %v1082 = vadd.f32 %v148, %v1016
  %v1083 = vadd.f32 %v149, %v1018
  %1084 = vst [vmem:[#allocation2] sm:$0xff] %v1020
  %1085 = vst [vmem:[#allocation2 + $0x8] sm:$0xff] %v1021
  %1086 = vst [vmem:[#allocation2 + $0x10] sm:$0xff] %v1022
  %1087 = vst [vmem:[#allocation2 + $0x18] sm:$0xff] %v1023
  %1088 = vst [vmem:[#allocation2 + $0x20] sm:$0xff] %v1024
  %1089 = vst [vmem:[#allocation2 + $0x28] sm:$0xff] %v1025
  %1090 = vst [vmem:[#allocation2 + $0x30] sm:$0xff] %v1026
  %1091 = vst [vmem:[#allocation2 + $0x38] sm:$0xff] %v1027
  %1092 = vst [vmem:[#allocation2 + $0x40] sm:$0xff] %v1028
  %1093 = vst [vmem:[#allocation2 + $0x48] sm:$0xff] %v1029
  %1094 = vst [vmem:[#allocation2 + $0x50] sm:$0xff] %v1030
  %1095 = vst [vmem:[#allocation2 + $0x58] sm:$0xff] %v1031
  %1096 = vst [vmem:[#allocation2 + $0x60] sm:$0xff] %v1032
  %1097 = vst [vmem:[#allocation2 + $0x68] sm:$0xff] %v1033
  %1098 = vst [vmem:[#allocation2 + $0x70] sm:$0xff] %v1034
  %1099 = vst [vmem:[#allocation2 + $0x78] sm:$0xff] %v1035
  %1100 = vst [vmem:[#allocation2 + $0x80] sm:$0xff] %v1036
  %1101 = vst [vmem:[#allocation2 + $0x88] sm:$0xff] %v1037
  %1102 = vst [vmem:[#allocation2 + $0x90] sm:$0xff] %v1038
  %1103 = vst [vmem:[#allocation2 + $0x98] sm:$0xff] %v1039
  %1104 = vst [vmem:[#allocation2 + $0xa0] sm:$0xff] %v1040
  %1105 = vst [vmem:[#allocation2 + $0xa8] sm:$0xff] %v1041
  %1106 = vst [vmem:[#allocation2 + $0xb0] sm:$0xff] %v1042
  %1107 = vst [vmem:[#allocation2 + $0xb8] sm:$0xff] %v1043
  %1108 = vst [vmem:[#allocation2 + $0xc0] sm:$0xff] %v1044
  %1109 = vst [vmem:[#allocation2 + $0xc8] sm:$0xff] %v1045
  %1110 = vst [vmem:[#allocation2 + $0xd0] sm:$0xff] %v1046
  %1111 = vst [vmem:[#allocation2 + $0xd8] sm:$0xff] %v1047
  %1112 = vst [vmem:[#allocation2 + $0xe0] sm:$0xff] %v1048
  %1113 = vst [vmem:[#allocation2 + $0xe8] sm:$0xff] %v1049
  %1114 = vst [vmem:[#allocation2 + $0xf0] sm:$0xff] %v1050
  %1115 = vst [vmem:[#allocation2 + $0xf8] sm:$0xff] %v1051
  %1116 = vst [vmem:[#allocation2 + $0x100] sm:$0xff] %v1052
  %1117 = vst [vmem:[#allocation2 + $0x108] sm:$0xff] %v1053
  %1118 = vst [vmem:[#allocation2 + $0x110] sm:$0xff] %v1054
  %1119 = vst [vmem:[#allocation2 + $0x118] sm:$0xff] %v1055
  %1120 = vst [vmem:[#allocation2 + $0x120] sm:$0xff] %v1056
  %1121 = vst [vmem:[#allocation2 + $0x128] sm:$0xff] %v1057
  %1122 = vst [vmem:[#allocation2 + $0x130] sm:$0xff] %v1058
  %1123 = vst [vmem:[#allocation2 + $0x138] sm:$0xff] %v1059
  %1124 = vst [vmem:[#allocation2 + $0x140] sm:$0xff] %v1060
  %1125 = vst [vmem:[#allocation2 + $0x148] sm:$0xff] %v1061
  %1126 = vst [vmem:[#allocation2 + $0x150] sm:$0xff] %v1062
  %1127 = vst [vmem:[#allocation2 + $0x158] sm:$0xff] %v1063
  %1128 = vst [vmem:[#allocation2 + $0x160] sm:$0xff] %v1064
  %1129 = vst [vmem:[#allocation2 + $0x168] sm:$0xff] %v1065
  %1130 = vst [vmem:[#allocation2 + $0x170] sm:$0xff] %v1066
  %1131 = vst [vmem:[#allocation2 + $0x178] sm:$0xff] %v1067
  %1132 = vst [vmem:[#allocation2 + $0x180] sm:$0xff] %v1068
  %1133 = vst [vmem:[#allocation2 + $0x188] sm:$0xff] %v1069
  %1134 = vst [vmem:[#allocation2 + $0x190] sm:$0xff] %v1070
  %1135 = vst [vmem:[#allocation2 + $0x198] sm:$0xff] %v1071
  %1136 = vst [vmem:[#allocation2 + $0x1a0] sm:$0xff] %v1072
  %1137 = vst [vmem:[#allocation2 + $0x1a8] sm:$0xff] %v1073
  %1138 = vst [vmem:[#allocation2 + $0x1b0] sm:$0xff] %v1074
  %1139 = vst [vmem:[#allocation2 + $0x1b8] sm:$0xff] %v1075
  %1140 = vst [vmem:[#allocation2 + $0x1c0] sm:$0xff] %v1076
  %1141 = vst [vmem:[#allocation2 + $0x1c8] sm:$0xff] %v1077
  %1142 = vst [vmem:[#allocation2 + $0x1d0] sm:$0xff] %v1078
  %1143 = vst [vmem:[#allocation2 + $0x1d8] sm:$0xff] %v1079
  %1144 = vst [vmem:[#allocation2 + $0x1e0] sm:$0xff] %v1080
  %1145 = vst [vmem:[#allocation2 + $0x1e8] sm:$0xff] %v1081
  %1146 = vst [vmem:[#allocation2 + $0x1f0] sm:$0xff] %v1082
  %1147 = vst [vmem:[#allocation2 + $0x1f8] sm:$0xff] %v1083
  // Predicated region
  $region22: #{_stem_forward.2} parent=0 // pred_check
    %p1148 = pneg %p18
  $region23: #{_stem_forward.2} parent=0 // pred_check_branch
    %1150 = sbr.rel (%p1148) target = $region25
  $region24: #{_stem_forward.2} parent=0 // pred_region
    %v1151 = vld [vmem:[#allocation2] sm:$0xff]
    %v1152 = vld [vmem:[#allocation2 + $0x8] sm:$0xff]
    %v1153 = vld [vmem:[#allocation2 + $0x10] sm:$0xff]
    %v1154 = vld [vmem:[#allocation2 + $0x18] sm:$0xff]
    %v1155 = vld [vmem:[#allocation2 + $0x20] sm:$0xff]
    %v1156 = vld [vmem:[#allocation2 + $0x28] sm:$0xff]
    %v1157 = vld [vmem:[#allocation2 + $0x30] sm:$0xff]
    %v1158 = vld [vmem:[#allocation2 + $0x38] sm:$0xff]
    %v1159 = vld [vmem:[#allocation2 + $0x40] sm:$0xff]
    %v1160 = vld [vmem:[#allocation2 + $0x48] sm:$0xff]
    %v1161 = vld [vmem:[#allocation2 + $0x50] sm:$0xff]
    %v1162 = vld [vmem:[#allocation2 + $0x58] sm:$0xff]
    %v1163 = vld [vmem:[#allocation2 + $0x60] sm:$0xff]
    %v1164 = vld [vmem:[#allocation2 + $0x68] sm:$0xff]
    %v1165 = vld [vmem:[#allocation2 + $0x70] sm:$0xff]
    %v1166 = vld [vmem:[#allocation2 + $0x78] sm:$0xff]
    %v1167 = vld [vmem:[#allocation2 + $0x80] sm:$0xff]
    %v1168 = vld [vmem:[#allocation2 + $0x88] sm:$0xff]
    %v1169 = vld [vmem:[#allocation2 + $0x90] sm:$0xff]
    %v1170 = vld [vmem:[#allocation2 + $0x98] sm:$0xff]
    %v1171 = vld [vmem:[#allocation2 + $0xa0] sm:$0xff]
    %v1172 = vld [vmem:[#allocation2 + $0xa8] sm:$0xff]
    %v1173 = vld [vmem:[#allocation2 + $0xb0] sm:$0xff]
    %v1174 = vld [vmem:[#allocation2 + $0xb8] sm:$0xff]
    %v1175 = vld [vmem:[#allocation2 + $0xc0] sm:$0xff]
    %v1176 = vld [vmem:[#allocation2 + $0xc8] sm:$0xff]
    %v1177 = vld [vmem:[#allocation2 + $0xd0] sm:$0xff]
    %v1178 = vld [vmem:[#allocation2 + $0xd8] sm:$0xff]
    %v1179 = vld [vmem:[#allocation2 + $0xe0] sm:$0xff]
    %v1180 = vld [vmem:[#allocation2 + $0xe8] sm:$0xff]
    %v1181 = vld [vmem:[#allocation2 + $0xf0] sm:$0xff]
    %v1182 = vld [vmem:[#allocation2 + $0xf8] sm:$0xff]
    %v1183 = vld [vmem:[#allocation2 + $0x100] sm:$0xff]
    %v1184 = vld [vmem:[#allocation2 + $0x108] sm:$0xff]
    %v1185 = vld [vmem:[#allocation2 + $0x110] sm:$0xff]
    %v1186 = vld [vmem:[#allocation2 + $0x118] sm:$0xff]
    %v1187 = vld [vmem:[#allocation2 + $0x120] sm:$0xff]
    %v1188 = vld [vmem:[#allocation2 + $0x128] sm:$0xff]
    %v1189 = vld [vmem:[#allocation2 + $0x130] sm:$0xff]
    %v1190 = vld [vmem:[#allocation2 + $0x138] sm:$0xff]
    %v1191 = vld [vmem:[#allocation2 + $0x140] sm:$0xff]
    %v1192 = vld [vmem:[#allocation2 + $0x148] sm:$0xff]
    %v1193 = vld [vmem:[#allocation2 + $0x150] sm:$0xff]
    %v1194 = vld [vmem:[#allocation2 + $0x158] sm:$0xff]
    %v1195 = vld [vmem:[#allocation2 + $0x160] sm:$0xff]
    %v1196 = vld [vmem:[#allocation2 + $0x168] sm:$0xff]
    %v1197 = vld [vmem:[#allocation2 + $0x170] sm:$0xff]
    %v1198 = vld [vmem:[#allocation2 + $0x178] sm:$0xff]
    %v1199 = vld [vmem:[#allocation2 + $0x180] sm:$0xff]
    %v1200 = vld [vmem:[#allocation2 + $0x188] sm:$0xff]
    %v1201 = vld [vmem:[#allocation2 + $0x190] sm:$0xff]
    %v1202 = vld [vmem:[#allocation2 + $0x198] sm:$0xff]
    %v1203 = vld [vmem:[#allocation2 + $0x1a0] sm:$0xff]
    %v1204 = vld [vmem:[#allocation2 + $0x1a8] sm:$0xff]
    %v1205 = vld [vmem:[#allocation2 + $0x1b0] sm:$0xff]
    %v1206 = vld [vmem:[#allocation2 + $0x1b8] sm:$0xff]
    %v1207 = vld [vmem:[#allocation2 + $0x1c0] sm:$0xff]
    %v1208 = vld [vmem:[#allocation2 + $0x1c8] sm:$0xff]
    %v1209 = vld [vmem:[#allocation2 + $0x1d0] sm:$0xff]
    %v1210 = vld [vmem:[#allocation2 + $0x1d8] sm:$0xff]
    %v1211 = vld [vmem:[#allocation2 + $0x1e0] sm:$0xff]
    %v1212 = vld [vmem:[#allocation2 + $0x1e8] sm:$0xff]
    %v1213 = vld [vmem:[#allocation2 + $0x1f0] sm:$0xff]
    %v1214 = vld [vmem:[#allocation2 + $0x1f8] sm:$0xff]
    %v1215 = vadd.f32 %v1151, %v1152
    %v1216 = vadd.f32 %v1215, %v1153
    %v1217 = vadd.f32 %v1216, %v1154
    %v1218 = vadd.f32 %v1217, %v1155
    %v1219 = vadd.f32 %v1218, %v1156
    %v1220 = vadd.f32 %v1219, %v1157
    %v1221 = vadd.f32 %v1220, %v1158
    %v1222 = vadd.f32 %v1221, %v1159
    %v1223 = vadd.f32 %v1222, %v1160
    %v1224 = vadd.f32 %v1223, %v1161
    %v1225 = vadd.f32 %v1224, %v1162
    %v1226 = vadd.f32 %v1225, %v1163
    %v1227 = vadd.f32 %v1226, %v1164
    %v1228 = vadd.f32 %v1227, %v1165
    %v1229 = vadd.f32 %v1228, %v1166
    %v1230 = vadd.f32 %v1229, %v1167
    %v1231 = vadd.f32 %v1230, %v1168
    %v1232 = vadd.f32 %v1231, %v1169
    %v1233 = vadd.f32 %v1232, %v1170
    %v1234 = vadd.f32 %v1233, %v1171
    %v1235 = vadd.f32 %v1234, %v1172
    %v1236 = vadd.f32 %v1235, %v1173
    %v1237 = vadd.f32 %v1236, %v1174
    %v1238 = vadd.f32 %v1237, %v1175
    %v1239 = vadd.f32 %v1238, %v1176
    %v1240 = vadd.f32 %v1239, %v1177
    %v1241 = vadd.f32 %v1240, %v1178
    %v1242 = vadd.f32 %v1241, %v1179
    %v1243 = vadd.f32 %v1242, %v1180
    %v1244 = vadd.f32 %v1243, %v1181
    %v1245 = vadd.f32 %v1244, %v1182
    %v1246 = vadd.f32 %v1245, %v1183
    %v1247 = vadd.f32 %v1246, %v1184
    %v1248 = vadd.f32 %v1247, %v1185
    %v1249 = vadd.f32 %v1248, %v1186
    %v1250 = vadd.f32 %v1249, %v1187
    %v1251 = vadd.f32 %v1250, %v1188
    %v1252 = vadd.f32 %v1251, %v1189
    %v1253 = vadd.f32 %v1252, %v1190
    %v1254 = vadd.f32 %v1253, %v1191
    %v1255 = vadd.f32 %v1254, %v1192
    %v1256 = vadd.f32 %v1255, %v1193
    %v1257 = vadd.f32 %v1256, %v1194
    %v1258 = vadd.f32 %v1257, %v1195
    %v1259 = vadd.f32 %v1258, %v1196
    %v1260 = vadd.f32 %v1259, %v1197
    %v1261 = vadd.f32 %v1260, %v1198
    %v1262 = vadd.f32 %v1261, %v1199
    %v1263 = vadd.f32 %v1262, %v1200
    %v1264 = vadd.f32 %v1263, %v1201
    %v1265 = vadd.f32 %v1264, %v1202
    %v1266 = vadd.f32 %v1265, %v1203
    %v1267 = vadd.f32 %v1266, %v1204
    %v1268 = vadd.f32 %v1267, %v1205
    %v1269 = vadd.f32 %v1268, %v1206
    %v1270 = vadd.f32 %v1269, %v1207
    %v1271 = vadd.f32 %v1270, %v1208
    %v1272 = vadd.f32 %v1271, %v1209
    %v1273 = vadd.f32 %v1272, %v1210
    %v1274 = vadd.f32 %v1273, %v1211
    %v1275 = vadd.f32 %v1274, %v1212
    %v1276 = vadd.f32 %v1275, %v1213
    %v1277 = vadd.f32 %v1276, %v1214
    %v1278 = vrot.slane %v1277, 4
    %v1279 = vadd.f32 %v1277, %v1278
    %v1280 = vrot.slane %v1279, 2
    %v1281 = vadd.f32 %v1279, %v1280
    %v1282 = vrot.slane %v1281, 1
    %v1283 = vadd.f32 %v1281, %v1282
    %v1284 = vmul.f32 %v1283, 0.001953125
    %v1285 = vsub.f32 %v1151, %v1284
    %v1286 = vsub.f32 %v1152, %v1284
    %v1287 = vsub.f32 %v1153, %v1284
    %v1288 = vsub.f32 %v1154, %v1284
    %v1289 = vsub.f32 %v1155, %v1284
    %v1290 = vsub.f32 %v1156, %v1284
    %v1291 = vsub.f32 %v1157, %v1284
    %v1292 = vsub.f32 %v1158, %v1284
    %v1293 = vsub.f32 %v1159, %v1284
    %v1294 = vsub.f32 %v1160, %v1284
    %v1295 = vsub.f32 %v1161, %v1284
    %v1296 = vsub.f32 %v1162, %v1284
    %v1297 = vsub.f32 %v1163, %v1284
    %v1298 = vsub.f32 %v1164, %v1284
    %v1299 = vsub.f32 %v1165, %v1284
    %v1300 = vsub.f32 %v1166, %v1284
    %v1301 = vsub.f32 %v1167, %v1284
    %v1302 = vsub.f32 %v1168, %v1284
    %v1303 = vsub.f32 %v1169, %v1284
    %v1304 = vsub.f32 %v1170, %v1284
    %v1305 = vsub.f32 %v1171, %v1284
    %v1306 = vsub.f32 %v1172, %v1284
    %v1307 = vsub.f32 %v1173, %v1284
    %v1308 = vsub.f32 %v1174, %v1284
    %v1309 = vsub.f32 %v1175, %v1284
    %v1310 = vsub.f32 %v1176, %v1284
    %v1311 = vsub.f32 %v1177, %v1284
    %v1312 = vsub.f32 %v1178, %v1284
    %v1313 = vsub.f32 %v1179, %v1284
    %v1314 = vsub.f32 %v1180, %v1284
    %v1315 = vsub.f32 %v1181, %v1284
    %v1316 = vsub.f32 %v1182, %v1284
    %v1317 = vsub.f32 %v1183, %v1284
    %v1318 = vsub.f32 %v1184, %v1284
    %v1319 = vsub.f32 %v1185, %v1284
    %v1320 = vsub.f32 %v1186, %v1284
    %v1321 = vsub.f32 %v1187, %v1284
    %v1322 = vsub.f32 %v1188, %v1284
    %v1323 = vsub.f32 %v1189, %v1284
    %v1324 = vsub.f32 %v1190, %v1284
    %v1325 = vsub.f32 %v1191, %v1284
    %v1326 = vsub.f32 %v1192, %v1284
    %v1327 = vsub.f32 %v1193, %v1284
    %v1328 = vsub.f32 %v1194, %v1284
    %v1329 = vsub.f32 %v1195, %v1284
    %v1330 = vsub.f32 %v1196, %v1284
    %v1331 = vsub.f32 %v1197, %v1284
    %v1332 = vsub.f32 %v1198, %v1284
    %v1333 = vsub.f32 %v1199, %v1284
    %v1334 = vsub.f32 %v1200, %v1284
    %v1335 = vsub.f32 %v1201, %v1284
    %v1336 = vsub.f32 %v1202, %v1284
    %v1337 = vsub.f32 %v1203, %v1284
    %v1338 = vsub.f32 %v1204, %v1284
    %v1339 = vsub.f32 %v1205, %v1284
    %v1340 = vsub.f32 %v1206, %v1284
    %v1341 = vsub.f32 %v1207, %v1284
    %v1342 = vsub.f32 %v1208, %v1284
    %v1343 = vsub.f32 %v1209, %v1284
    %v1344 = vsub.f32 %v1210, %v1284
    %v1345 = vsub.f32 %v1211, %v1284
    %v1346 = vsub.f32 %v1212, %v1284
    %v1347 = vsub.f32 %v1213, %v1284
    %v1348 = vsub.f32 %v1214, %v1284
    %v1349 = vmul.f32 %v1285, %v1285
    %v1350 = vmul.f32 %v1286, %v1286
    %v1351 = vmul.f32 %v1287, %v1287
    %v1352 = vmul.f32 %v1288, %v1288
    %v1353 = vmul.f32 %v1289, %v1289
    %v1354 = vmul.f32 %v1290, %v1290
    %v1355 = vmul.f32 %v1291, %v1291
    %v1356 = vmul.f32 %v1292, %v1292
    %v1357 = vmul.f32 %v1293, %v1293
    %v1358 = vmul.f32 %v1294, %v1294
    %v1359 = vmul.f32 %v1295, %v1295
    %v1360 = vmul.f32 %v1296, %v1296
    %v1361 = vmul.f32 %v1297, %v1297
    %v1362 = vmul.f32 %v1298, %v1298
    %v1363 = vmul.f32 %v1299, %v1299
    %v1364 = vmul.f32 %v1300, %v1300
    %v1365 = vmul.f32 %v1301, %v1301
    %v1366 = vmul.f32 %v1302, %v1302
    %v1367 = vmul.f32 %v1303, %v1303
    %v1368 = vmul.f32 %v1304, %v1304
    %v1369 = vmul.f32 %v1305, %v1305
    %v1370 = vmul.f32 %v1306, %v1306
    %v1371 = vmul.f32 %v1307, %v1307
    %v1372 = vmul.f32 %v1308, %v1308
    %v1373 = vmul.f32 %v1309, %v1309
    %v1374 = vmul.f32 %v1310, %v1310
    %v1375 = vmul.f32 %v1311, %v1311
    %v1376 = vmul.f32 %v1312, %v1312
    %v1377 = vmul.f32 %v1313, %v1313
    %v1378 = vmul.f32 %v1314, %v1314
    %v1379 = vmul.f32 %v1315, %v1315
    %v1380 = vmul.f32 %v1316, %v1316
    %v1381 = vmul.f32 %v1317, %v1317
    %v1382 = vmul.f32 %v1318, %v1318
    %v1383 = vmul.f32 %v1319, %v1319
    %v1384 = vmul.f32 %v1320, %v1320
    %v1385 = vmul.f32 %v1321, %v1321
    %v1386 = vmul.f32 %v1322, %v1322
    %v1387 = vmul.f32 %v1323, %v1323
    %v1388 = vmul.f32 %v1324, %v1324
    %v1389 = vmul.f32 %v1325, %v1325
    %v1390 = vmul.f32 %v1326, %v1326
    %v1391 = vmul.f32 %v1327, %v1327
    %v1392 = vmul.f32 %v1328, %v1328
    %v1393 = vmul.f32 %v1329, %v1329
    %v1394 = vmul.f32 %v1330, %v1330
    %v1395 = vmul.f32 %v1331, %v1331
    %v1396 = vmul.f32 %v1332, %v1332
    %v1397 = vmul.f32 %v1333, %v1333
    %v1398 = vmul.f32 %v1334, %v1334
    %v1399 = vmul.f32 %v1335, %v1335
    %v1400 = vmul.f32 %v1336, %v1336
    %v1401 = vmul.f32 %v1337, %v1337
    %v1402 = vmul.f32 %v1338, %v1338
    %v1403 = vmul.f32 %v1339, %v1339
    %v1404 = vmul.f32 %v1340, %v1340
    %v1405 = vmul.f32 %v1341, %v1341
    %v1406 = vmul.f32 %v1342, %v1342
    %v1407 = vmul.f32 %v1343, %v1343
    %v1408 = vmul.f32 %v1344, %v1344
    %v1409 = vmul.f32 %v1345, %v1345
    %v1410 = vmul.f32 %v1346, %v1346
    %v1411 = vmul.f32 %v1347, %v1347
    %v1412 = vmul.f32 %v1348, %v1348
    %v1413 = vadd.f32 %v1349, %v1350
    %v1414 = vadd.f32 %v1413, %v1351
    %v1415 = vadd.f32 %v1414, %v1352
    %v1416 = vadd.f32 %v1415, %v1353
    %v1417 = vadd.f32 %v1416, %v1354
    %v1418 = vadd.f32 %v1417, %v1355
    %v1419 = vadd.f32 %v1418, %v1356
    %v1420 = vadd.f32 %v1419, %v1357
    %v1421 = vadd.f32 %v1420, %v1358
    %v1422 = vadd.f32 %v1421, %v1359
    %v1423 = vadd.f32 %v1422, %v1360
    %v1424 = vadd.f32 %v1423, %v1361
    %v1425 = vadd.f32 %v1424, %v1362
    %v1426 = vadd.f32 %v1425, %v1363
    %v1427 = vadd.f32 %v1426, %v1364
    %v1428 = vadd.f32 %v1427, %v1365
    %v1429 = vadd.f32 %v1428, %v1366
    %v1430 = vadd.f32 %v1429, %v1367
    %v1431 = vadd.f32 %v1430, %v1368
    %v1432 = vadd.f32 %v1431, %v1369
    %v1433 = vadd.f32 %v1432, %v1370
    %v1434 = vadd.f32 %v1433, %v1371
    %v1435 = vadd.f32 %v1434, %v1372
    %v1436 = vadd.f32 %v1435, %v1373
    %v1437 = vadd.f32 %v1436, %v1374
    %v1438 = vadd.f32 %v1437, %v1375
    %v1439 = vadd.f32 %v1438, %v1376
    %v1440 = vadd.f32 %v1439, %v1377
    %v1441 = vadd.f32 %v1440, %v1378
    %v1442 = vadd.f32 %v1441, %v1379
    %v1443 = vadd.f32 %v1442, %v1380
    %v1444 = vadd.f32 %v1443, %v1381
    %v1445 = vadd.f32 %v1444, %v1382
    %v1446 = vadd.f32 %v1445, %v1383
    %v1447 = vadd.f32 %v1446, %v1384
    %v1448 = vadd.f32 %v1447, %v1385
    %v1449 = vadd.f32 %v1448, %v1386
    %v1450 = vadd.f32 %v1449, %v1387
    %v1451 = vadd.f32 %v1450, %v1388
    %v1452 = vadd.f32 %v1451, %v1389
    %v1453 = vadd.f32 %v1452, %v1390
    %v1454 = vadd.f32 %v1453, %v1391
    %v1455 = vadd.f32 %v1454, %v1392
    %v1456 = vadd.f32 %v1455, %v1393
    %v1457 = vadd.f32 %v1456, %v1394
    %v1458 = vadd.f32 %v1457, %v1395
    %v1459 = vadd.f32 %v1458, %v1396
    %v1460 = vadd.f32 %v1459, %v1397
    %v1461 = vadd.f32 %v1460, %v1398
    %v1462 = vadd.f32 %v1461, %v1399
    %v1463 = vadd.f32 %v1462, %v1400
    %v1464 = vadd.f32 %v1463, %v1401
    %v1465 = vadd.f32 %v1464, %v1402
    %v1466 = vadd.f32 %v1465, %v1403
    %v1467 = vadd.f32 %v1466, %v1404
    %v1468 = vadd.f32 %v1467, %v1405
    %v1469 = vadd.f32 %v1468, %v1406
    %v1470 = vadd.f32 %v1469, %v1407
    %v1471 = vadd.f32 %v1470, %v1408
    %v1472 = vadd.f32 %v1471, %v1409
    %v1473 = vadd.f32 %v1472, %v1410
    %v1474 = vadd.f32 %v1473, %v1411
    %v1475 = vadd.f32 %v1474, %v1412
    %v1476 = vrot.slane %v1475, 4
    %v1477 = vadd.f32 %v1475, %v1476
    %v1478 = vrot.slane %v1477, 2
    %v1479 = vadd.f32 %v1477, %v1478
    %v1480 = vrot.slane %v1479, 1
    %v1481 = vadd.f32 %v1479, %v1480
    %v1482 = vmul.f32 %v1481, 0.001953125
    %v1483 = vld [vmem:[%s2] sm:$0x1]
    %v1484 = vadd.f32 %v1482, 1e-05
    %v1485 = vrsqrt.pop %v1484
    %v1486 = vmul.f32 %v1485, %v1484
    %v1487 = vmul.f32 %v1486, %v1485
    %v1488 = vmul.f32 0.5, %v1487
    %v1489 = vsub.f32 1.5, %v1488
    %v1490 = vmul.f32 %v1485, %v1489
    %vm1491 = vweird.f32 %v1484
    %vm1492 = vweird.f32 %v1485
    %vm1493 = vmor %vm1491, %vm1492
    %v1494 = vsel %vm1493, %v1485, %v1490
    %v1495 = vmul.f32 %v1483, %v1494
    %v1497 = vperm.slane %v1495, 0
    %v1499 = vmul.f32 %v1285, %v1497
    %v1500 = vmul.f32 %v1286, %v1497
    %v1501 = vmul.f32 %v1287, %v1497
    %v1502 = vmul.f32 %v1288, %v1497
    %v1503 = vmul.f32 %v1289, %v1497
    %v1504 = vmul.f32 %v1290, %v1497
    %v1505 = vmul.f32 %v1291, %v1497
    %v1506 = vmul.f32 %v1292, %v1497
    %v1507 = vmul.f32 %v1293, %v1497
    %v1508 = vmul.f32 %v1294, %v1497
    %v1509 = vmul.f32 %v1295, %v1497
    %v1510 = vmul.f32 %v1296, %v1497
    %v1511 = vmul.f32 %v1297, %v1497
    %v1512 = vmul.f32 %v1298, %v1497
    %v1513 = vmul.f32 %v1299, %v1497
    %v1514 = vmul.f32 %v1300, %v1497
    %v1515 = vmul.f32 %v1301, %v1497
    %v1516 = vmul.f32 %v1302, %v1497
    %v1517 = vmul.f32 %v1303, %v1497
    %v1518 = vmul.f32 %v1304, %v1497
    %v1519 = vmul.f32 %v1305, %v1497
    %v1520 = vmul.f32 %v1306, %v1497
    %v1521 = vmul.f32 %v1307, %v1497
    %v1522 = vmul.f32 %v1308, %v1497
    %v1523 = vmul.f32 %v1309, %v1497
    %v1524 = vmul.f32 %v1310, %v1497
    %v1525 = vmul.f32 %v1311, %v1497
    %v1526 = vmul.f32 %v1312, %v1497
    %v1527 = vmul.f32 %v1313, %v1497
    %v1528 = vmul.f32 %v1314, %v1497
    %v1529 = vmul.f32 %v1315, %v1497
    %v1530 = vmul.f32 %v1316, %v1497
    %v1531 = vmul.f32 %v1317, %v1497
    %v1532 = vmul.f32 %v1318, %v1497
    %v1533 = vmul.f32 %v1319, %v1497
    %v1534 = vmul.f32 %v1320, %v1497
    %v1535 = vmul.f32 %v1321, %v1497
    %v1536 = vmul.f32 %v1322, %v1497
    %v1537 = vmul.f32 %v1323, %v1497
    %v1538 = vmul.f32 %v1324, %v1497
    %v1539 = vmul.f32 %v1325, %v1497
    %v1540 = vmul.f32 %v1326, %v1497
    %v1541 = vmul.f32 %v1327, %v1497
    %v1542 = vmul.f32 %v1328, %v1497
    %v1543 = vmul.f32 %v1329, %v1497
    %v1544 = vmul.f32 %v1330, %v1497
    %v1545 = vmul.f32 %v1331, %v1497
    %v1546 = vmul.f32 %v1332, %v1497
    %v1547 = vmul.f32 %v1333, %v1497
    %v1548 = vmul.f32 %v1334, %v1497
    %v1549 = vmul.f32 %v1335, %v1497
    %v1550 = vmul.f32 %v1336, %v1497
    %v1551 = vmul.f32 %v1337, %v1497
    %v1552 = vmul.f32 %v1338, %v1497
    %v1553 = vmul.f32 %v1339, %v1497
    %v1554 = vmul.f32 %v1340, %v1497
    %v1555 = vmul.f32 %v1341, %v1497
    %v1556 = vmul.f32 %v1342, %v1497
    %v1557 = vmul.f32 %v1343, %v1497
    %v1558 = vmul.f32 %v1344, %v1497
    %v1559 = vmul.f32 %v1345, %v1497
    %v1560 = vmul.f32 %v1346, %v1497
    %v1561 = vmul.f32 %v1347, %v1497
    %v1562 = vmul.f32 %v1348, %v1497
    %v1563 = vld [vmem:[%s3] sm:$0x1]
    %v1565 = vperm.slane %v1563, 0
    %v1567 = vadd.f32 %v1499, %v1565
    %v1568 = vadd.f32 %v1500, %v1565
    %v1569 = vadd.f32 %v1501, %v1565
    %v1570 = vadd.f32 %v1502, %v1565
    %v1571 = vadd.f32 %v1503, %v1565
    %v1572 = vadd.f32 %v1504, %v1565
    %v1573 = vadd.f32 %v1505, %v1565
    %v1574 = vadd.f32 %v1506, %v1565
    %v1575 = vadd.f32 %v1507, %v1565
    %v1576 = vadd.f32 %v1508, %v1565
    %v1577 = vadd.f32 %v1509, %v1565
    %v1578 = vadd.f32 %v1510, %v1565
    %v1579 = vadd.f32 %v1511, %v1565
    %v1580 = vadd.f32 %v1512, %v1565
    %v1581 = vadd.f32 %v1513, %v1565
    %v1582 = vadd.f32 %v1514, %v1565
    %v1583 = vadd.f32 %v1515, %v1565
    %v1584 = vadd.f32 %v1516, %v1565
    %v1585 = vadd.f32 %v1517, %v1565
    %v1586 = vadd.f32 %v1518, %v1565
    %v1587 = vadd.f32 %v1519, %v1565
    %v1588 = vadd.f32 %v1520, %v1565
    %v1589 = vadd.f32 %v1521, %v1565
    %v1590 = vadd.f32 %v1522, %v1565
    %v1591 = vadd.f32 %v1523, %v1565
    %v1592 = vadd.f32 %v1524, %v1565
    %v1593 = vadd.f32 %v1525, %v1565
    %v1594 = vadd.f32 %v1526, %v1565
    %v1595 = vadd.f32 %v1527, %v1565
    %v1596 = vadd.f32 %v1528, %v1565
    %v1597 = vadd.f32 %v1529, %v1565
    %v1598 = vadd.f32 %v1530, %v1565
    %v1599 = vadd.f32 %v1531, %v1565
    %v1600 = vadd.f32 %v1532, %v1565
    %v1601 = vadd.f32 %v1533, %v1565
    %v1602 = vadd.f32 %v1534, %v1565
    %v1603 = vadd.f32 %v1535, %v1565
    %v1604 = vadd.f32 %v1536, %v1565
    %v1605 = vadd.f32 %v1537, %v1565
    %v1606 = vadd.f32 %v1538, %v1565
    %v1607 = vadd.f32 %v1539, %v1565
    %v1608 = vadd.f32 %v1540, %v1565
    %v1609 = vadd.f32 %v1541, %v1565
    %v1610 = vadd.f32 %v1542, %v1565
    %v1611 = vadd.f32 %v1543, %v1565
    %v1612 = vadd.f32 %v1544, %v1565
    %v1613 = vadd.f32 %v1545, %v1565
    %v1614 = vadd.f32 %v1546, %v1565
    %v1615 = vadd.f32 %v1547, %v1565
    %v1616 = vadd.f32 %v1548, %v1565
    %v1617 = vadd.f32 %v1549, %v1565
    %v1618 = vadd.f32 %v1550, %v1565
    %v1619 = vadd.f32 %v1551, %v1565
    %v1620 = vadd.f32 %v1552, %v1565
    %v1621 = vadd.f32 %v1553, %v1565
    %v1622 = vadd.f32 %v1554, %v1565
    %v1623 = vadd.f32 %v1555, %v1565
    %v1624 = vadd.f32 %v1556, %v1565
    %v1625 = vadd.f32 %v1557, %v1565
    %v1626 = vadd.f32 %v1558, %v1565
    %v1627 = vadd.f32 %v1559, %v1565
    %v1628 = vadd.f32 %v1560, %v1565
    %v1629 = vadd.f32 %v1561, %v1565
    %v1630 = vadd.f32 %v1562, %v1565
    %v1631 = vmax.f32 %v1567, 0.0
    %v1632 = vmax.f32 %v1568, 0.0
    %v1633 = vmax.f32 %v1569, 0.0
    %v1634 = vmax.f32 %v1570, 0.0
    %v1635 = vmax.f32 %v1571, 0.0
    %v1636 = vmax.f32 %v1572, 0.0
    %v1637 = vmax.f32 %v1573, 0.0
    %v1638 = vmax.f32 %v1574, 0.0
    %v1639 = vmax.f32 %v1575, 0.0
    %v1640 = vmax.f32 %v1576, 0.0
    %v1641 = vmax.f32 %v1577, 0.0
    %v1642 = vmax.f32 %v1578, 0.0
    %v1643 = vmax.f32 %v1579, 0.0
    %v1644 = vmax.f32 %v1580, 0.0
    %v1645 = vmax.f32 %v1581, 0.0
    %v1646 = vmax.f32 %v1582, 0.0
    %v1647 = vmax.f32 %v1583, 0.0
    %v1648 = vmax.f32 %v1584, 0.0
    %v1649 = vmax.f32 %v1585, 0.0
    %v1650 = vmax.f32 %v1586, 0.0
    %v1651 = vmax.f32 %v1587, 0.0
    %v1652 = vmax.f32 %v1588, 0.0
    %v1653 = vmax.f32 %v1589, 0.0
    %v1654 = vmax.f32 %v1590, 0.0
    %v1655 = vmax.f32 %v1591, 0.0
    %v1656 = vmax.f32 %v1592, 0.0
    %v1657 = vmax.f32 %v1593, 0.0
    %v1658 = vmax.f32 %v1594, 0.0
    %v1659 = vmax.f32 %v1595, 0.0
    %v1660 = vmax.f32 %v1596, 0.0
    %v1661 = vmax.f32 %v1597, 0.0
    %v1662 = vmax.f32 %v1598, 0.0
    %v1663 = vmax.f32 %v1599, 0.0
    %v1664 = vmax.f32 %v1600, 0.0
    %v1665 = vmax.f32 %v1601, 0.0
    %v1666 = vmax.f32 %v1602, 0.0
    %v1667 = vmax.f32 %v1603, 0.0
    %v1668 = vmax.f32 %v1604, 0.0
    %v1669 = vmax.f32 %v1605, 0.0
    %v1670 = vmax.f32 %v1606, 0.0
    %v1671 = vmax.f32 %v1607, 0.0
    %v1672 = vmax.f32 %v1608, 0.0
    %v1673 = vmax.f32 %v1609, 0.0
    %v1674 = vmax.f32 %v1610, 0.0
    %v1675 = vmax.f32 %v1611, 0.0
    %v1676 = vmax.f32 %v1612, 0.0
    %v1677 = vmax.f32 %v1613, 0.0
    %v1678 = vmax.f32 %v1614, 0.0
    %v1679 = vmax.f32 %v1615, 0.0
    %v1680 = vmax.f32 %v1616, 0.0
    %v1681 = vmax.f32 %v1617, 0.0
    %v1682 = vmax.f32 %v1618, 0.0
    %v1683 = vmax.f32 %v1619, 0.0
    %v1684 = vmax.f32 %v1620, 0.0
    %v1685 = vmax.f32 %v1621, 0.0
    %v1686 = vmax.f32 %v1622, 0.0
    %v1687 = vmax.f32 %v1623, 0.0
    %v1688 = vmax.f32 %v1624, 0.0
    %v1689 = vmax.f32 %v1625, 0.0
    %v1690 = vmax.f32 %v1626, 0.0
    %v1691 = vmax.f32 %v1627, 0.0
    %v1692 = vmax.f32 %v1628, 0.0
    %v1693 = vmax.f32 %v1629, 0.0
    %v1694 = vmax.f32 %v1630, 0.0
    %v1695 = vpack.c.bf16 %v1631, %v1631
    %v1696 = vpack.c.bf16 %v1632, %v1632
    %v1697 = vpack.c.bf16 %v1633, %v1633
    %v1698 = vpack.c.bf16 %v1634, %v1634
    %v1699 = vpack.c.bf16 %v1635, %v1635
    %v1700 = vpack.c.bf16 %v1636, %v1636
    %v1701 = vpack.c.bf16 %v1637, %v1637
    %v1702 = vpack.c.bf16 %v1638, %v1638
    %v1703 = vpack.c.bf16 %v1639, %v1639
    %v1704 = vpack.c.bf16 %v1640, %v1640
    %v1705 = vpack.c.bf16 %v1641, %v1641
    %v1706 = vpack.c.bf16 %v1642, %v1642
    %v1707 = vpack.c.bf16 %v1643, %v1643
    %v1708 = vpack.c.bf16 %v1644, %v1644
    %v1709 = vpack.c.bf16 %v1645, %v1645
    %v1710 = vpack.c.bf16 %v1646, %v1646
    %v1711 = vpack.c.bf16 %v1647, %v1647
    %v1712 = vpack.c.bf16 %v1648, %v1648
    %v1713 = vpack.c.bf16 %v1649, %v1649
    %v1714 = vpack.c.bf16 %v1650, %v1650
    %v1715 = vpack.c.bf16 %v1651, %v1651
    %v1716 = vpack.c.bf16 %v1652, %v1652
    %v1717 = vpack.c.bf16 %v1653, %v1653
    %v1718 = vpack.c.bf16 %v1654, %v1654
    %v1719 = vpack.c.bf16 %v1655, %v1655
    %v1720 = vpack.c.bf16 %v1656, %v1656
    %v1721 = vpack.c.bf16 %v1657, %v1657
    %v1722 = vpack.c.bf16 %v1658, %v1658
    %v1723 = vpack.c.bf16 %v1659, %v1659
    %v1724 = vpack.c.bf16 %v1660, %v1660
    %v1725 = vpack.c.bf16 %v1661, %v1661
    %v1726 = vpack.c.bf16 %v1662, %v1662
    %v1727 = vpack.c.bf16 %v1663, %v1663
    %v1728 = vpack.c.bf16 %v1664, %v1664
    %v1729 = vpack.c.bf16 %v1665, %v1665
    %v1730 = vpack.c.bf16 %v1666, %v1666
    %v1731 = vpack.c.bf16 %v1667, %v1667
    %v1732 = vpack.c.bf16 %v1668, %v1668
    %v1733 = vpack.c.bf16 %v1669, %v1669
    %v1734 = vpack.c.bf16 %v1670, %v1670
    %v1735 = vpack.c.bf16 %v1671, %v1671
    %v1736 = vpack.c.bf16 %v1672, %v1672
    %v1737 = vpack.c.bf16 %v1673, %v1673
    %v1738 = vpack.c.bf16 %v1674, %v1674
    %v1739 = vpack.c.bf16 %v1675, %v1675
    %v1740 = vpack.c.bf16 %v1676, %v1676
    %v1741 = vpack.c.bf16 %v1677, %v1677
    %v1742 = vpack.c.bf16 %v1678, %v1678
    %v1743 = vpack.c.bf16 %v1679, %v1679
    %v1744 = vpack.c.bf16 %v1680, %v1680
    %v1745 = vpack.c.bf16 %v1681, %v1681
    %v1746 = vpack.c.bf16 %v1682, %v1682
    %v1747 = vpack.c.bf16 %v1683, %v1683
    %v1748 = vpack.c.bf16 %v1684, %v1684
    %v1749 = vpack.c.bf16 %v1685, %v1685
    %v1750 = vpack.c.bf16 %v1686, %v1686
    %v1751 = vpack.c.bf16 %v1687, %v1687
    %v1752 = vpack.c.bf16 %v1688, %v1688
    %v1753 = vpack.c.bf16 %v1689, %v1689
    %v1754 = vpack.c.bf16 %v1690, %v1690
    %v1755 = vpack.c.bf16 %v1691, %v1691
    %v1756 = vpack.c.bf16 %v1692, %v1692
    %v1757 = vpack.c.bf16 %v1693, %v1693
    %v1758 = vpack.c.bf16 %v1694, %v1694
    %1759 = vst [vmem:[%s4] sm:$0xf] %v1695
    %1760 = vst [vmem:[%s4 + $0x4] sm:$0xf] %v1696
    %1761 = vst [vmem:[%s4 + $0x8] sm:$0xf] %v1697
    %1762 = vst [vmem:[%s4 + $0xc] sm:$0xf] %v1698
    %1763 = vst [vmem:[%s4 + $0x10] sm:$0xf] %v1699
    %1764 = vst [vmem:[%s4 + $0x14] sm:$0xf] %v1700
    %1765 = vst [vmem:[%s4 + $0x18] sm:$0xf] %v1701
    %1766 = vst [vmem:[%s4 + $0x1c] sm:$0xf] %v1702
    %1767 = vst [vmem:[%s4 + $0x20] sm:$0xf] %v1703
    %1768 = vst [vmem:[%s4 + $0x24] sm:$0xf] %v1704
    %1769 = vst [vmem:[%s4 + $0x28] sm:$0xf] %v1705
    %1770 = vst [vmem:[%s4 + $0x2c] sm:$0xf] %v1706
    %1771 = vst [vmem:[%s4 + $0x30] sm:$0xf] %v1707
    %1772 = vst [vmem:[%s4 + $0x34] sm:$0xf] %v1708
    %1773 = vst [vmem:[%s4 + $0x38] sm:$0xf] %v1709
    %1774 = vst [vmem:[%s4 + $0x3c] sm:$0xf] %v1710
    %1775 = vst [vmem:[%s4 + $0x40] sm:$0xf] %v1711
    %1776 = vst [vmem:[%s4 + $0x44] sm:$0xf] %v1712
    %1777 = vst [vmem:[%s4 + $0x48] sm:$0xf] %v1713
    %1778 = vst [vmem:[%s4 + $0x4c] sm:$0xf] %v1714
    %1779 = vst [vmem:[%s4 + $0x50] sm:$0xf] %v1715
    %1780 = vst [vmem:[%s4 + $0x54] sm:$0xf] %v1716
    %1781 = vst [vmem:[%s4 + $0x58] sm:$0xf] %v1717
    %1782 = vst [vmem:[%s4 + $0x5c] sm:$0xf] %v1718
    %1783 = vst [vmem:[%s4 + $0x60] sm:$0xf] %v1719
    %1784 = vst [vmem:[%s4 + $0x64] sm:$0xf] %v1720
    %1785 = vst [vmem:[%s4 + $0x68] sm:$0xf] %v1721
    %1786 = vst [vmem:[%s4 + $0x6c] sm:$0xf] %v1722
    %1787 = vst [vmem:[%s4 + $0x70] sm:$0xf] %v1723
    %1788 = vst [vmem:[%s4 + $0x74] sm:$0xf] %v1724
    %1789 = vst [vmem:[%s4 + $0x78] sm:$0xf] %v1725
    %1790 = vst [vmem:[%s4 + $0x7c] sm:$0xf] %v1726
    %1791 = vst [vmem:[%s4 + $0x80] sm:$0xf] %v1727
    %1792 = vst [vmem:[%s4 + $0x84] sm:$0xf] %v1728
    %1793 = vst [vmem:[%s4 + $0x88] sm:$0xf] %v1729
    %1794 = vst [vmem:[%s4 + $0x8c] sm:$0xf] %v1730
    %1795 = vst [vmem:[%s4 + $0x90] sm:$0xf] %v1731
    %1796 = vst [vmem:[%s4 + $0x94] sm:$0xf] %v1732
    %1797 = vst [vmem:[%s4 + $0x98] sm:$0xf] %v1733
    %1798 = vst [vmem:[%s4 + $0x9c] sm:$0xf] %v1734
    %1799 = vst [vmem:[%s4 + $0xa0] sm:$0xf] %v1735
    %1800 = vst [vmem:[%s4 + $0xa4] sm:$0xf] %v1736
    %1801 = vst [vmem:[%s4 + $0xa8] sm:$0xf] %v1737
    %1802 = vst [vmem:[%s4 + $0xac] sm:$0xf] %v1738
    %1803 = vst [vmem:[%s4 + $0xb0] sm:$0xf] %v1739
    %1804 = vst [vmem:[%s4 + $0xb4] sm:$0xf] %v1740
    %1805 = vst [vmem:[%s4 + $0xb8] sm:$0xf] %v1741
    %1806 = vst [vmem:[%s4 + $0xbc] sm:$0xf] %v1742
    %1807 = vst [vmem:[%s4 + $0xc0] sm:$0xf] %v1743
    %1808 = vst [vmem:[%s4 + $0xc4] sm:$0xf] %v1744
    %1809 = vst [vmem:[%s4 + $0xc8] sm:$0xf] %v1745
    %1810 = vst [vmem:[%s4 + $0xcc] sm:$0xf] %v1746
    %1811 = vst [vmem:[%s4 + $0xd0] sm:$0xf] %v1747
    %1812 = vst [vmem:[%s4 + $0xd4] sm:$0xf] %v1748
    %1813 = vst [vmem:[%s4 + $0xd8] sm:$0xf] %v1749
    %1814 = vst [vmem:[%s4 + $0xdc] sm:$0xf] %v1750
    %1815 = vst [vmem:[%s4 + $0xe0] sm:$0xf] %v1751
    %1816 = vst [vmem:[%s4 + $0xe4] sm:$0xf] %v1752
    %1817 = vst [vmem:[%s4 + $0xe8] sm:$0xf] %v1753
    %1818 = vst [vmem:[%s4 + $0xec] sm:$0xf] %v1754
    %1819 = vst [vmem:[%s4 + $0xf0] sm:$0xf] %v1755
    %1820 = vst [vmem:[%s4 + $0xf4] sm:$0xf] %v1756
    %1821 = vst [vmem:[%s4 + $0xf8] sm:$0xf] %v1757
    %1822 = vst [vmem:[%s4 + $0xfc] sm:$0xf] %v1758
  $region25: #{_stem_forward.2} parent=0 // pred_fallthru
    _
  // Predicated region
  $region26: #{_stem_forward.2} parent=0 // pred_check
    _
  $region27: #{_stem_forward.2} parent=0 // pred_check_branch
    %1824 = sbr.rel (0) target = $region29
  $region28: #{_stem_forward.2} parent=0 // pred_region
    _
  $region29: #{_stem_forward.2} parent=0 // pred_fallthru
    _
  // Predicated region
  $region30: #{_stem_forward.2} parent=0 // pred_check
    _
  $region31: #{_stem_forward.2} parent=0 // pred_check_branch
    %1826 = sbr.rel (0) target = $region33
  $region32: #{_stem_forward.2} parent=0 // pred_region
    _
  $region33: #{_stem_forward.2} parent=0 // pred_fallthru
    _

</llo_original>
